<compile_context>
chip_gen: v7x
topology: tpu7x:2x2x1
jax: 0.10.0
libtpu: 0.0.40
codegen_flags: <defaults>
</compile_context>

<pallas_src>
import jax
import jax.numpy as jnp
from jax.experimental import pallas as pl
from jax.experimental.pallas import tpu as pltpu

LANE = 128  # vreg lane width


def _round_up(x, m):
    return (x + m - 1) // m * m


# ----------------------------- Pallas kernel ------------------------------- #
def _mlp_fwd_kernel(x_ref, w1_ref, b1_ref, w2_ref, b2_ref, o_ref, acc_ref):
    """One (batch-tile, hid-tile) grid step of the fused MLP forward.

    grid = (batch_tiles, hid_tiles); hid axis is the reduction of the second
    matmul, so the output block is revisited across it and accumulated into
    the f32 scratch, finalized on the last hid step.
    """
    j = pl.program_id(1)

    @pl.when(j == 0)
    def _init():
        acc_ref[...] = jnp.zeros_like(acc_ref)

    # In-kernel cast of the streamed activations to bf16 (VPU; hidden under
    # the MXU).  Weights arrive pre-cast bf16.
    x = x_ref[...].astype(jnp.bfloat16)

    # fc1 slice: [TB, D_in_p] @ [D_in_p, THID] -> f32 on the MXU.
    h = jnp.dot(x, w1_ref[...], preferred_element_type=jnp.float32)
    # Bias + GELU in f32 on the accumulator (v5e has no bf16 VPU/EUP path).
    # NOTE: jax.nn.gelu defaults to the tanh approximation; torch.nn.GELU()
    # defaults to exact erf.  The in-file reference uses the same
    # approximation, so the self-test is exact w.r.t. this choice.
    h = jax.nn.gelu(h + b1_ref[...])
    # Back to bf16 so the second matmul is bf16-native on the MXU too.
    h = h.astype(jnp.bfloat16)

    # fc2 partial: [TB, THID] @ [THID, D_out_p] accumulated in f32 scratch.
    acc_ref[...] += jnp.dot(h, w2_ref[...], preferred_element_type=jnp.float32)

    @pl.when(j == pl.num_programs(1) - 1)
    def _finalize():
        o_ref[...] = (acc_ref[...] + b2_ref[...]).astype(o_ref.dtype)


# --------------------------- parameter packing ----------------------------- #
def prepare_mlp_params(w1, b1, w2, b2, *, block_hid=512):
    """Pad to lane-dense shapes and cast ONCE (bf16 weights, f32 biases).

    Returns a dict consumed by mlp_forward_pallas on every forward call.
    Zero padding is mathematically exact for matmul + bias + GELU.
    """
    d_in, d_hid = w1.shape
    d_out = w2.shape[1]

    d_in_p = _round_up(d_in, LANE)
    d_out_p = _round_up(d_out, LANE)
    d_hid_128 = _round_up(d_hid, LANE)
    if d_hid_128 <= block_hid:
        thid = d_hid_128          # single hid step (demo / small models)
        d_hid_p = d_hid_128
    else:
        thid = _round_up(block_hid, LANE)
        d_hid_p = _round_up(d_hid, thid)

    def pad2(a, rows, cols, dtype):
        pr, pc = rows - a.shape[0], cols - a.shape[1]
        if pr or pc:
            a = jnp.pad(a, ((0, pr), (0, pc)))
        return a.astype(dtype)

    return dict(
        w1=pad2(w1, d_in_p, d_hid_p, jnp.bfloat16),
        b1=pad2(b1.reshape(1, -1), 1, d_hid_p, jnp.float32),
        w2=pad2(w2, d_hid_p, d_out_p, jnp.bfloat16),
        b2=pad2(b2.reshape(1, -1), 1, d_out_p, jnp.float32),
        d_in=d_in, d_out=d_out,
        d_in_p=d_in_p, d_hid_p=d_hid_p, d_out_p=d_out_p, thid=thid,
    )


# ------------------------------ forward call -------------------------------- #
def mlp_forward_pallas(x, params, *, out_dtype=jnp.bfloat16, block_b=256,
                       single_step_batch=512):
    """Fused MLP forward.  x: [B, D_in] (float), params from prepare_mlp_params.

    Returns [B, D_out] in `out_dtype` (f32 accumulation throughout).
    """
    B, d_in = x.shape
    assert d_in == params["d_in"], "x feature dim does not match weights"
    d_in_p = params["d_in_p"]
    d_hid_p = params["d_hid_p"]
    d_out_p = params["d_out_p"]
    d_out = params["d_out"]
    thid = params["thid"]

    # Batch tiling: a single grid step for small batches (per-step overhead
    # ~0.35 us dominates the demo's ~tens-of-ns of FLOPs), else TB=256 to
    # fill the 256x256 MXU (v6e/v7x) with fewer grid steps (fine on v5e too).
    b8 = _round_up(B, 8)                    # f32 x sublane multiple
    if b8 <= single_step_batch:
        tb = b8
        b_p = b8
    else:
        tb = block_b
        b_p = _round_up(B, tb)

    # Pad x only (rows + input features); keep f32, cast to bf16 in-kernel.
    pr, pc = b_p - B, d_in_p - d_in
    xp = jnp.pad(x, ((0, pr), (0, pc))) if (pr or pc) else x
    xp = xp.astype(jnp.float32)

    grid = (b_p // tb, d_hid_p // thid)

    # Explicit scoped-VMEM budget: double-buffered tiles + accumulator, with
    # headroom, clamped to v7x's 64 MiB physical VMEM per TensorCore.
    out_itemsize = jnp.dtype(out_dtype).itemsize
    tile_bytes = (
        tb * d_in_p * 4           # x tile (f32)
        + d_in_p * thid * 2       # w1 tile (bf16)
        + thid * 4                # b1 tile
        + thid * d_out_p * 2      # w2 tile (bf16)
        + d_out_p * 4             # b2 tile
        + tb * d_out_p * out_itemsize  # out tile
    )
    vmem_need = 2 * tile_bytes + tb * d_out_p * 4  # 2-deep buffers + f32 acc
    vmem_limit = min(64 * 1024 * 1024,
                     max(int(1.5 * vmem_need) + (1 << 20), 32 * 1024 * 1024))

    flops = 2 * b_p * (d_in_p * d_hid_p + d_hid_p * d_out_p)
    transcendentals = b_p * d_hid_p  # tanh inside GELU
    bytes_accessed = (
        xp.size * 4
        + params["w1"].size * 2 + params["w2"].size * 2
        + params["b1"].size * 4 + params["b2"].size * 4
        + b_p * d_out_p * out_itemsize
    )

    out = pl.pallas_call(
        _mlp_fwd_kernel,
        out_shape=jax.ShapeDtypeStruct((b_p, d_out_p), out_dtype),
        grid_spec=pltpu.PrefetchScalarGridSpec(
            num_scalar_prefetch=0,
            grid=grid,
            in_specs=[
                # x: re-used across hid steps (same block index -> no re-DMA),
                # streams per batch tile.
                pl.BlockSpec((tb, d_in_p), lambda i, j: (i, 0)),
                # Hid-tiled weight slices stream along j (double-buffered).
                pl.BlockSpec((d_in_p, thid), lambda i, j: (0, j)),
                pl.BlockSpec((1, thid), lambda i, j: (0, j)),
                pl.BlockSpec((thid, d_out_p), lambda i, j: (j, 0)),
                # b2 is grid-invariant (tiny) -> resident.
                pl.BlockSpec((1, d_out_p), lambda i, j: (0, 0)),
            ],
            out_specs=pl.BlockSpec((tb, d_out_p), lambda i, j: (i, 0)),
            scratch_shapes=[pltpu.VMEM((tb, d_out_p), jnp.float32)],
        ),
        compiler_params=pltpu.CompilerParams(
            # Batch axis independent -> parallel (megacore on v7x); hid axis
            # is the fc2 reduction -> arbitrary, placed last in the grid.
            dimension_semantics=("parallel", "arbitrary"),
            vmem_limit_bytes=vmem_limit,
        ),
        cost_estimate=pl.CostEstimate(
            flops=flops,
            transcendentals=transcendentals,
            bytes_accessed=bytes_accessed,
        ),
    )(xp, params["w1"], params["b1"], params["w2"], params["b2"])

    if b_p == B and d_out_p == d_out:
        return out
    return out[:B, :d_out]


# ------------------------- Module / DDP wrappers ---------------------------- #
class MLP:
    """The wrapped 'torch.nn.Module' equivalent: Linear -> GELU -> Linear."""

    def __init__(self, d_in, d_hid, d_out, key, *, block_hid=512,
                 out_dtype=jnp.bfloat16):
        k1, k2 = jax.random.split(key)
        self.w1 = (jax.random.normal(k1, (d_in, d_hid), jnp.float32)
                   / jnp.sqrt(d_in))
        self.b1 = jnp.zeros((1, d_hid), jnp.float32)
        self.w2 = (jax.random.normal(k2, (d_hid, d_out), jnp.float32)
                   / jnp.sqrt(d_hid))
        self.b2 = jnp.zeros((1, d_out), jnp.float32)
        self.out_dtype = out_dtype
        # Pad + cast weights ONCE; reused every forward (no per-call HBM
        # pad/convert traffic in front of the kernel).
        self._packed = prepare_mlp_params(self.w1, self.b1, self.w2, self.b2,
                                          block_hid=block_hid)

    def __call__(self, x):
        return mlp_forward_pallas(x, self._packed, out_dtype=self.out_dtype)

    def parameters(self):
        return [self.w1, self.b1, self.w2, self.b2]


class DistributedDataParallel:
    """DDP wrapper: forward() simply delegates to the wrapped module.

    The gradient-buffer / bucketing / all-reduce machinery of the PyTorch
    class only affects backward-time communication and has no effect on the
    forward semantics reproduced here.
    """

    def __init__(self, module, data_parallel_world_size=1,
                 accumulate_allreduce_grads_in_fp32=True,
                 overlap_grad_reduce=True,
                 use_distributed_optimizer=False,
                 disable_bucketing=False,
                 bucket_size=40000000):
        self.module = module
        self.data_parallel_world_size = data_parallel_world_size
        self.overlap_grad_reduce = overlap_grad_reduce
        self.use_distributed_optimizer = use_distributed_optimizer
        self.bucket_size = (None if (not overlap_grad_reduce or disable_bucketing)
                            else bucket_size)
        grad_dtype = jnp.float32 if accumulate_allreduce_grads_in_fp32 else None
        # fp32 main-grad buffers (forward-irrelevant; kept for shape parity).
        self.grad_buffers = {
            grad_dtype: [jnp.zeros(p.shape, grad_dtype or p.dtype)
                         for p in module.parameters()]
        }
        # TODO(synk): backward grad hooks + bucketed all-reduce/reduce-scatter
        # comm have no forward-pass Pallas equivalent (they would be
        # make_async_remote_copy collectives driven by autodiff hooks).

    def __call__(self, *inputs, **kwargs):
        return self.forward(*inputs, **kwargs)

    def forward(self, *inputs, **kwargs):
        """Calls the wrapped module's forward() method."""
        return self.module(*inputs, **kwargs)

    def zero_grad_buffer(self, zero_buffer=True):
        if zero_buffer:
            self.grad_buffers = {
                dt: [jnp.zeros_like(g) for g in bufs]
                for dt, bufs in self.grad_buffers.items()
            }


# --------------------------------- main ------------------------------------ #
if __name__ == "__main__":
    key = jax.random.PRNGKey(0)
    k_x, k_mlp = jax.random.split(key)

    # Lane-dense demo shapes; batch 512 collapses to a single grid step.
    batch, d_in, d_hid, d_out = 512, 128, 256, 128
    x = jax.random.normal(k_x, (batch, d_in), jnp.float32)

    mlp = MLP(d_in, d_hid, d_out, k_mlp)
    ddp_module = DistributedDataParallel(module=mlp)

    out = jax.block_until_ready(ddp_module(x))

    # Pure-JAX reference matching the kernel's bf16-operand / f32-accum path.
    xq = x.astype(jnp.bfloat16).astype(jnp.float32)
    w1q = mlp.w1.astype(jnp.bfloat16).astype(jnp.float32)
    w2q = mlp.w2.astype(jnp.bfloat16).astype(jnp.float32)
    h = jax.nn.gelu(xq @ w1q + mlp.b1)
    h = h.astype(jnp.bfloat16).astype(jnp.float32)
    ref = h @ w2q + mlp.b2

    assert out.shape == (batch, d_out)
    assert out.dtype == jnp.bfloat16
    assert jnp.allclose(out.astype(jnp.float32), ref, atol=3e-2, rtol=3e-2)

    print("KERNEL_OK")
</pallas_src>

<mosaic_0001>
module attributes {stable_mosaic.version = 11 : i64} {
  func.func @_mlp_fwd_kernel(%arg0: i32, %arg1: i32, %arg2: memref<512x128xf32, #tpu.memory_space<vmem>>, %arg3: memref<128x256xbf16, #tpu.memory_space<vmem>>, %arg4: memref<1x256xf32, #tpu.memory_space<vmem>>, %arg5: memref<256x128xbf16, #tpu.memory_space<vmem>>, %arg6: memref<1x128xf32, #tpu.memory_space<vmem>>, %arg7: memref<512x128xbf16, #tpu.memory_space<vmem>>, %arg8: memref<512x128xf32, #tpu.memory_space<vmem>>) attributes {dimension_semantics = [#tpu.dimension_semantics<parallel>, #tpu.dimension_semantics<arbitrary>], iteration_bounds = array<i64: 1, 1>, scalar_prefetch = 0 : i64, scratch_operands = 1 : i64, tpu.core_type = #tpu.core_type<tc>, window_params = [{transform_indices = @transform_0, window_bounds = array<i64: 512, 128>}, {transform_indices = @transform_1, window_bounds = array<i64: 128, 256>}, {transform_indices = @transform_2, window_bounds = array<i64: 1, 256>}, {transform_indices = @transform_3, window_bounds = array<i64: 256, 128>}, {pipeline_mode = #tpu.pipeline_mode<synchronous>, transform_indices = @transform_4, window_bounds = array<i64: 1, 128>}, {transform_indices = @transform_5, window_bounds = array<i64: 512, 128>}]} {
    %c0_i32 = arith.constant 0 : i32
    %0 = arith.cmpi eq, %arg1, %c0_i32 : i32
    %1 = arith.extui %0 : i1 to i32
    %c0_i32_0 = arith.constant 0 : i32
    %2 = arith.cmpi ne, %1, %c0_i32_0 : i32
    scf.if %2 {
      %cst_19 = arith.constant 0.000000e+00 : f32
      %32 = vector.broadcast %cst_19 : f32 to vector<512x128xf32>
      %c0_20 = arith.constant 0 : index
      %c0_21 = arith.constant 0 : index
      %33 = vector.load %arg8[%c0_20, %c0_21] : memref<512x128xf32, #tpu.memory_space<vmem>>, vector<512x128xf32>
      tpu.vector_store %arg8[%c0_20, %c0_21], %32 {strides = array<i32>} : memref<512x128xf32, #tpu.memory_space<vmem>>, vector<512x128xf32>,
    } else {
    }
    %c0 = arith.constant 0 : index
    %c0_1 = arith.constant 0 : index
    %3 = vector.load %arg2[%c0, %c0_1] : memref<512x128xf32, #tpu.memory_space<vmem>>, vector<512x128xf32>
    %4 = arith.truncf %3 : vector<512x128xf32> to vector<512x128xbf16>
    %c0_2 = arith.constant 0 : index
    %c0_3 = arith.constant 0 : index
    %5 = vector.load %arg3[%c0_2, %c0_3] : memref<128x256xbf16, #tpu.memory_space<vmem>>, vector<128x256xbf16>
    %cst = arith.constant dense<0.000000e+00> : vector<512x256xf32>
    %6 = tpu.matmul %4, %5, %cst {dimension_numbers = #tpu.dot_dimension_numbers<[1], [0], [0], [1], [0, 0, 1, 1], [], []>} : vector<512x128xbf16>, vector<128x256xbf16>, vector<512x256xf32> -> vector<512x256xf32>
    %c0_4 = arith.constant 0 : index
    %c0_5 = arith.constant 0 : index
    %7 = vector.load %arg4[%c0_4, %c0_5] : memref<1x256xf32, #tpu.memory_space<vmem>>, vector<1x256xf32>
    %8 = vector.broadcast %7 : vector<1x256xf32> to vector<512x256xf32>
    %9 = arith.addf %6, %8 : vector<512x256xf32>
    %10 = arith.mulf %9, %9 : vector<512x256xf32>
    %11 = arith.mulf %9, %10 : vector<512x256xf32>
    %cst_6 = arith.constant 4.471500e-02 : f32
    %12 = vector.broadcast %cst_6 : f32 to vector<512x256xf32>
    %13 = arith.mulf %12, %11 : vector<512x256xf32>
    %14 = arith.addf %9, %13 : vector<512x256xf32>
    %cst_7 = arith.constant 0.797884583 : f32
    %15 = vector.broadcast %cst_7 : f32 to vector<512x256xf32>
    %16 = arith.mulf %15, %14 : vector<512x256xf32>
    %17 = math.tanh %16 : vector<512x256xf32>
    %cst_8 = arith.constant 1.000000e+00 : f32
    %18 = vector.broadcast %cst_8 : f32 to vector<512x256xf32>
    %19 = arith.addf %18, %17 : vector<512x256xf32>
    %cst_9 = arith.constant 5.000000e-01 : f32
    %20 = vector.broadcast %cst_9 : f32 to vector<512x256xf32>
    %21 = arith.mulf %20, %19 : vector<512x256xf32>
    %22 = arith.mulf %9, %21 : vector<512x256xf32>
    %23 = arith.truncf %22 : vector<512x256xf32> to vector<512x256xbf16>
    %c0_10 = arith.constant 0 : index
    %c0_11 = arith.constant 0 : index
    %24 = vector.load %arg8[%c0_10, %c0_11] : memref<512x128xf32, #tpu.memory_space<vmem>>, vector<512x128xf32>
    %c0_12 = arith.constant 0 : index
    %c0_13 = arith.constant 0 : index
    %25 = vector.load %arg5[%c0_12, %c0_13] : memref<256x128xbf16, #tpu.memory_space<vmem>>, vector<256x128xbf16>
    %cst_14 = arith.constant dense<0.000000e+00> : vector<512x128xf32>
    %26 = tpu.matmul %23, %25, %cst_14 {dimension_numbers = #tpu.dot_dimension_numbers<[1], [0], [0], [1], [0, 0, 1, 1], [], []>} : vector<512x256xbf16>, vector<256x128xbf16>, vector<512x128xf32> -> vector<512x128xf32>
    %27 = arith.addf %24, %26 : vector<512x128xf32>
    %c0_15 = arith.constant 0 : index
    %c0_16 = arith.constant 0 : index
    %28 = vector.load %arg8[%c0_15, %c0_16] : memref<512x128xf32, #tpu.memory_space<vmem>>, vector<512x128xf32>
    tpu.vector_store %arg8[%c0_15, %c0_16], %27 {strides = array<i32>} : memref<512x128xf32, #tpu.memory_space<vmem>>, vector<512x128xf32>,
    %c0_i32_17 = arith.constant 0 : i32
    %29 = arith.cmpi eq, %arg1, %c0_i32_17 : i32
    %30 = arith.extui %29 : i1 to i32
    %c0_i32_18 = arith.constant 0 : i32
    %31 = arith.cmpi ne, %30, %c0_i32_18 : i32
    scf.if %31 {
      %c0_19 = arith.constant 0 : index
      %c0_20 = arith.constant 0 : index
      %32 = vector.load %arg8[%c0_19, %c0_20] : memref<512x128xf32, #tpu.memory_space<vmem>>, vector<512x128xf32>
      %c0_21 = arith.constant 0 : index
      %c0_22 = arith.constant 0 : index
      %33 = vector.load %arg6[%c0_21, %c0_22] : memref<1x128xf32, #tpu.memory_space<vmem>>, vector<1x128xf32>
      %34 = vector.broadcast %33 : vector<1x128xf32> to vector<512x128xf32>
      %35 = arith.addf %32, %34 : vector<512x128xf32>
      %36 = arith.truncf %35 : vector<512x128xf32> to vector<512x128xbf16>
      %c0_23 = arith.constant 0 : index
      %c0_24 = arith.constant 0 : index
      %37 = vector.load %arg7[%c0_23, %c0_24] : memref<512x128xbf16, #tpu.memory_space<vmem>>, vector<512x128xbf16>
      tpu.vector_store %arg7[%c0_23, %c0_24], %36 {strides = array<i32>} : memref<512x128xbf16, #tpu.memory_space<vmem>>, vector<512x128xbf16>,
    } else {
    }
    return
  }
  func.func @transform_0(%arg0: i32, %arg1: i32) -> (i32, i32) {
    %c0_i32 = arith.constant 0 : i32
    %c0_i32_0 = arith.constant 0 : i32
    return %arg0, %c0_i32 : i32, i32
  }
  func.func @transform_1(%arg0: i32, %arg1: i32) -> (i32, i32) {
    %c0_i32 = arith.constant 0 : i32
    %c0_i32_0 = arith.constant 0 : i32
    return %c0_i32, %arg1 : i32, i32
  }
  func.func @transform_2(%arg0: i32, %arg1: i32) -> (i32, i32) {
    %c0_i32 = arith.constant 0 : i32
    %c0_i32_0 = arith.constant 0 : i32
    return %c0_i32, %arg1 : i32, i32
  }
  func.func @transform_3(%arg0: i32, %arg1: i32) -> (i32, i32) {
    %c0_i32 = arith.constant 0 : i32
    %c0_i32_0 = arith.constant 0 : i32
    return %arg1, %c0_i32 : i32, i32
  }
  func.func @transform_4(%arg0: i32, %arg1: i32) -> (i32, i32) {
    %c0_i32 = arith.constant 0 : i32
    %c0_i32_0 = arith.constant 0 : i32
    %c0_i32_1 = arith.constant 0 : i32
    return %c0_i32, %c0_i32_0 : i32, i32
  }
  func.func @transform_5(%arg0: i32, %arg1: i32) -> (i32, i32) {
    %c0_i32 = arith.constant 0 : i32
    %c0_i32_0 = arith.constant 0 : i32
    return %arg0, %c0_i32 : i32, i32
  }
}

</mosaic_0001>

<llo_original>
// kernel: tpu_custom_call.1
$region0: #{tpu_custom_call.1}
  #allocation0 [shape = 'u32[]', space=smem, size = 0x4, offset = 0x4, fixed_abs, tag = 'smem constant byte address 0x4 - core index']
  #allocation1 [shape = 'u32[144,128]{1,0:T(1,128)}', space=vmem, size = 0x12000, scoped, tag = 'internal scratch']
  #allocation2 [shape = 'f32[512,128]{1,0:T(8,128)}', space=vmem, size = 0x40000, scoped, tag = 'scratch operand']
  %s0 = inlined_call_operand.hbm [shape: f32[512,128], index: 0, kind: input, shape index: {}]
  %s1 = inlined_call_operand.hbm [shape: bf16[128,256], index: 1, kind: input, shape index: {}]
  %s2 = inlined_call_operand.vmem [shape: f32[1,256], index: 2, kind: input, shape index: {}]
  %s3 = inlined_call_operand.hbm [shape: bf16[256,128], index: 3, kind: input, shape index: {}]
  %s4 = inlined_call_operand.vmem [shape: f32[1,128], index: 4, kind: input, shape index: {}]
  %s5 = inlined_call_operand.hbm [shape: bf16[512,128], index: 5, kind: output, shape index: {}]
  %s6 = sld [smem:[#allocation0]]
  $region50: #{tpu_custom_call.1} parent=0
    _
  %s8 = ssub.s32 1, %s6
  %s9 = scalar_select 0, %s8, %s6
  $region1: #{tpu_custom_call.1} parent=0
    #allocation3 [shape = 'u8[262144]{0}', space=vmem, size = 0x40000, scoped, tag = 'input window, operand 0, single buffered']
    #allocation4 [shape = 's32[1]{0}', space=sflag, size = 0x4, scoped, tag = 'scoped memory for tpu_custom_call.1']
    #allocation5 [shape = 's32[1]{0}', space=sflag, size = 0x4, scoped, tag = 'scoped memory for tpu_custom_call.1']
    #allocation6 [shape = 'u8[65536]{0}', space=vmem, size = 0x10000, scoped, tag = 'input window, operand 1, single buffered']
    #allocation7 [shape = 's32[1]{0}', space=sflag, size = 0x4, scoped, tag = 'scoped memory for tpu_custom_call.1']
    #allocation8 [shape = 'u8[65536]{0}', space=vmem, size = 0x10000, scoped, tag = 'input window, operand 3, single buffered']
    #allocation9 [shape = 'u8[131072]{0}', space=vmem, size = 0x20000, scoped, tag = 'output window, operand 0, single buffered']
    %10 = vsyncpa [#allocation4], 0
    %11 = vsyncpa [#allocation7], 0
    %12 = vsyncpa [#allocation5], 0
    // Predicated region
    $region2: #{tpu_custom_call.1} parent=1 // pred_check
      _
    $region3: #{tpu_custom_call.1} parent=1 // pred_check_branch
      %14 = sbr.rel (0) target = $region5
    $region4: #{tpu_custom_call.1} parent=1 // pred_region
      %s16 = ssub.s32 8192, 8192
      %17 = vsyncadd [#allocation4], %s16
      %s18 = sshll.u32 [#allocation3], 4
      %s19 = int_to_ptr.vmem [resolvable:$true] %s18
      %24 = dma.hbm_to_vmem [thread:$0]  %s0, 8192, %s19, [#allocation4], 128, 128, 8
    $region5: #{tpu_custom_call.1} parent=1 // pred_fallthru
      _
    // Predicated region
    $region6: #{tpu_custom_call.1} parent=1 // pred_check
      _
    $region7: #{tpu_custom_call.1} parent=1 // pred_check_branch
      %26 = sbr.rel (0) target = $region9
    $region8: #{tpu_custom_call.1} parent=1 // pred_region
      %s28 = ssub.s32 2048, 2048
      %29 = vsyncadd [#allocation7], %s28
      %s30 = sshll.u32 [#allocation6], 4
      %s31 = int_to_ptr.vmem [resolvable:$true] %s30
      %36 = dma.hbm_to_vmem [thread:$0]  %s1, 2048, %s31, [#allocation7], 128, 128, 8
    $region9: #{tpu_custom_call.1} parent=1 // pred_fallthru
      _
    // Predicated region
    $region10: #{tpu_custom_call.1} parent=1 // pred_check
      _
    $region11: #{tpu_custom_call.1} parent=1 // pred_check_branch
      %38 = sbr.rel (0) target = $region13
    $region12: #{tpu_custom_call.1} parent=1 // pred_region
      _
    $region13: #{tpu_custom_call.1} parent=1 // pred_fallthru
      _
    // Predicated region
    $region14: #{tpu_custom_call.1} parent=1 // pred_check
      _
    $region15: #{tpu_custom_call.1} parent=1 // pred_check_branch
      %40 = sbr.rel (0) target = $region17
    $region16: #{tpu_custom_call.1} parent=1 // pred_region
      %s42 = ssub.s32 2048, 2048
      %43 = vsyncadd [#allocation7], %s42
      %s44 = sshll.u32 [#allocation8], 4
      %s45 = int_to_ptr.vmem [resolvable:$true] %s44
      %50 = dma.hbm_to_vmem [thread:$0]  %s3, 2048, %s45, [#allocation7], 64, 64, 4
    $region17: #{tpu_custom_call.1} parent=1 // pred_fallthru
      _
    // Predicated region
    $region18: #{tpu_custom_call.1} parent=1 // pred_check
      _
    $region19: #{tpu_custom_call.1} parent=1 // pred_check_branch
      %52 = sbr.rel (0) target = $region21
    $region20: #{tpu_custom_call.1} parent=1 // pred_region
      _
    $region21: #{tpu_custom_call.1} parent=1 // pred_fallthru
      _
    // Predicated region
    $region22: #{tpu_custom_call.1} parent=1 // pred_check
      _
    $region23: #{tpu_custom_call.1} parent=1 // pred_check_branch
      %54 = sbr.rel (0) target = $region25
    $region24: #{tpu_custom_call.1} parent=1 // pred_region
      %55 = dma.done [#allocation4], 8192
    $region25: #{tpu_custom_call.1} parent=1 // pred_fallthru
      _
    // Predicated region
    $region26: #{tpu_custom_call.1} parent=1 // pred_check
      _
    $region27: #{tpu_custom_call.1} parent=1 // pred_check_branch
      %57 = sbr.rel (0) target = $region29
    $region28: #{tpu_custom_call.1} parent=1 // pred_region
      %58 = dma.done [#allocation7], 2048
    $region29: #{tpu_custom_call.1} parent=1 // pred_fallthru
      _
    // Predicated region
    $region30: #{tpu_custom_call.1} parent=1 // pred_check
      _
    $region31: #{tpu_custom_call.1} parent=1 // pred_check_branch
      %60 = sbr.rel (0) target = $region33
    $region32: #{tpu_custom_call.1} parent=1 // pred_region
      %61 = dma.done [#allocation7], 2048
    $region33: #{tpu_custom_call.1} parent=1 // pred_fallthru
      _
    %p63 = scmp.eq.s32.totalorder 0, 0
    // Predicated region
    $region34: #{tpu_custom_call.1} parent=1 // pred_check
      %p64 = pneg %p63
    $region35: #{tpu_custom_call.1} parent=1 // pred_check_branch
      %66 = sbr.rel (%p64) target = $region37
    $region36: #{tpu_custom_call.1} parent=1 // pred_region
      %67 = vst [vmem:[#allocation2] sm:$0xff] 0.0
      %68 = vst [vmem:[#allocation2 + $0x8] sm:$0xff] 0.0
      %69 = vst [vmem:[#allocation2 + $0x10] sm:$0xff] 0.0
      %70 = vst [vmem:[#allocation2 + $0x18] sm:$0xff] 0.0
      %71 = vst [vmem:[#allocation2 + $0x20] sm:$0xff] 0.0
      %72 = vst [vmem:[#allocation2 + $0x28] sm:$0xff] 0.0
      %73 = vst [vmem:[#allocation2 + $0x30] sm:$0xff] 0.0
      %74 = vst [vmem:[#allocation2 + $0x38] sm:$0xff] 0.0
      %75 = vst [vmem:[#allocation2 + $0x40] sm:$0xff] 0.0
      %76 = vst [vmem:[#allocation2 + $0x48] sm:$0xff] 0.0
      %77 = vst [vmem:[#allocation2 + $0x50] sm:$0xff] 0.0
      %78 = vst [vmem:[#allocation2 + $0x58] sm:$0xff] 0.0
      %79 = vst [vmem:[#allocation2 + $0x60] sm:$0xff] 0.0
      %80 = vst [vmem:[#allocation2 + $0x68] sm:$0xff] 0.0
      %81 = vst [vmem:[#allocation2 + $0x70] sm:$0xff] 0.0
      %82 = vst [vmem:[#allocation2 + $0x78] sm:$0xff] 0.0
      %83 = vst [vmem:[#allocation2 + $0x80] sm:$0xff] 0.0
      %84 = vst [vmem:[#allocation2 + $0x88] sm:$0xff] 0.0
      %85 = vst [vmem:[#allocation2 + $0x90] sm:$0xff] 0.0
      %86 = vst [vmem:[#allocation2 + $0x98] sm:$0xff] 0.0
      %87 = vst [vmem:[#allocation2 + $0xa0] sm:$0xff] 0.0
      %88 = vst [vmem:[#allocation2 + $0xa8] sm:$0xff] 0.0
      %89 = vst [vmem:[#allocation2 + $0xb0] sm:$0xff] 0.0
      %90 = vst [vmem:[#allocation2 + $0xb8] sm:$0xff] 0.0
      %91 = vst [vmem:[#allocation2 + $0xc0] sm:$0xff] 0.0
      %92 = vst [vmem:[#allocation2 + $0xc8] sm:$0xff] 0.0
      %93 = vst [vmem:[#allocation2 + $0xd0] sm:$0xff] 0.0
      %94 = vst [vmem:[#allocation2 + $0xd8] sm:$0xff] 0.0
      %95 = vst [vmem:[#allocation2 + $0xe0] sm:$0xff] 0.0
      %96 = vst [vmem:[#allocation2 + $0xe8] sm:$0xff] 0.0
      %97 = vst [vmem:[#allocation2 + $0xf0] sm:$0xff] 0.0
      %98 = vst [vmem:[#allocation2 + $0xf8] sm:$0xff] 0.0
      %99 = vst [vmem:[#allocation2 + $0x100] sm:$0xff] 0.0
      %100 = vst [vmem:[#allocation2 + $0x108] sm:$0xff] 0.0
      %101 = vst [vmem:[#allocation2 + $0x110] sm:$0xff] 0.0
      %102 = vst [vmem:[#allocation2 + $0x118] sm:$0xff] 0.0
      %103 = vst [vmem:[#allocation2 + $0x120] sm:$0xff] 0.0
      %104 = vst [vmem:[#allocation2 + $0x128] sm:$0xff] 0.0
      %105 = vst [vmem:[#allocation2 + $0x130] sm:$0xff] 0.0
      %106 = vst [vmem:[#allocation2 + $0x138] sm:$0xff] 0.0
      %107 = vst [vmem:[#allocation2 + $0x140] sm:$0xff] 0.0
      %108 = vst [vmem:[#allocation2 + $0x148] sm:$0xff] 0.0
      %109 = vst [vmem:[#allocation2 + $0x150] sm:$0xff] 0.0
      %110 = vst [vmem:[#allocation2 + $0x158] sm:$0xff] 0.0
      %111 = vst [vmem:[#allocation2 + $0x160] sm:$0xff] 0.0
      %112 = vst [vmem:[#allocation2 + $0x168] sm:$0xff] 0.0
      %113 = vst [vmem:[#allocation2 + $0x170] sm:$0xff] 0.0
      %114 = vst [vmem:[#allocation2 + $0x178] sm:$0xff] 0.0
      %115 = vst [vmem:[#allocation2 + $0x180] sm:$0xff] 0.0
      %116 = vst [vmem:[#allocation2 + $0x188] sm:$0xff] 0.0
      %117 = vst [vmem:[#allocation2 + $0x190] sm:$0xff] 0.0
      %118 = vst [vmem:[#allocation2 + $0x198] sm:$0xff] 0.0
      %119 = vst [vmem:[#allocation2 + $0x1a0] sm:$0xff] 0.0
      %120 = vst [vmem:[#allocation2 + $0x1a8] sm:$0xff] 0.0
      %121 = vst [vmem:[#allocation2 + $0x1b0] sm:$0xff] 0.0
      %122 = vst [vmem:[#allocation2 + $0x1b8] sm:$0xff] 0.0
      %123 = vst [vmem:[#allocation2 + $0x1c0] sm:$0xff] 0.0
      %124 = vst [vmem:[#allocation2 + $0x1c8] sm:$0xff] 0.0
      %125 = vst [vmem:[#allocation2 + $0x1d0] sm:$0xff] 0.0
      %126 = vst [vmem:[#allocation2 + $0x1d8] sm:$0xff] 0.0
      %127 = vst [vmem:[#allocation2 + $0x1e0] sm:$0xff] 0.0
      %128 = vst [vmem:[#allocation2 + $0x1e8] sm:$0xff] 0.0
      %129 = vst [vmem:[#allocation2 + $0x1f0] sm:$0xff] 0.0
      %130 = vst [vmem:[#allocation2 + $0x1f8] sm:$0xff] 0.0
    $region37: #{tpu_custom_call.1} parent=1 // pred_fallthru
      _
    %v131 = vld [vmem:[#allocation3] sm:$0xff]
    %v132 = vld [vmem:[#allocation3 + $0x8] sm:$0xff]
    %v133 = vld [vmem:[#allocation3 + $0x10] sm:$0xff]
    %v134 = vld [vmem:[#allocation3 + $0x18] sm:$0xff]
    %v135 = vld [vmem:[#allocation3 + $0x20] sm:$0xff]
    %v136 = vld [vmem:[#allocation3 + $0x28] sm:$0xff]
    %v137 = vld [vmem:[#allocation3 + $0x30] sm:$0xff]
    %v138 = vld [vmem:[#allocation3 + $0x38] sm:$0xff]
    %v139 = vld [vmem:[#allocation3 + $0x40] sm:$0xff]
    %v140 = vld [vmem:[#allocation3 + $0x48] sm:$0xff]
    %v141 = vld [vmem:[#allocation3 + $0x50] sm:$0xff]
    %v142 = vld [vmem:[#allocation3 + $0x58] sm:$0xff]
    %v143 = vld [vmem:[#allocation3 + $0x60] sm:$0xff]
    %v144 = vld [vmem:[#allocation3 + $0x68] sm:$0xff]
    %v145 = vld [vmem:[#allocation3 + $0x70] sm:$0xff]
    %v146 = vld [vmem:[#allocation3 + $0x78] sm:$0xff]
    %v147 = vld [vmem:[#allocation3 + $0x80] sm:$0xff]
    %v148 = vld [vmem:[#allocation3 + $0x88] sm:$0xff]
    %v149 = vld [vmem:[#allocation3 + $0x90] sm:$0xff]
    %v150 = vld [vmem:[#allocation3 + $0x98] sm:$0xff]
    %v151 = vld [vmem:[#allocation3 + $0xa0] sm:$0xff]
    %v152 = vld [vmem:[#allocation3 + $0xa8] sm:$0xff]
    %v153 = vld [vmem:[#allocation3 + $0xb0] sm:$0xff]
    %v154 = vld [vmem:[#allocation3 + $0xb8] sm:$0xff]
    %v155 = vld [vmem:[#allocation3 + $0xc0] sm:$0xff]
    %v156 = vld [vmem:[#allocation3 + $0xc8] sm:$0xff]
    %v157 = vld [vmem:[#allocation3 + $0xd0] sm:$0xff]
    %v158 = vld [vmem:[#allocation3 + $0xd8] sm:$0xff]
    %v159 = vld [vmem:[#allocation3 + $0xe0] sm:$0xff]
    %v160 = vld [vmem:[#allocation3 + $0xe8] sm:$0xff]
    %v161 = vld [vmem:[#allocation3 + $0xf0] sm:$0xff]
    %v162 = vld [vmem:[#allocation3 + $0xf8] sm:$0xff]
    %v163 = vld [vmem:[#allocation3 + $0x100] sm:$0xff]
    %v164 = vld [vmem:[#allocation3 + $0x108] sm:$0xff]
    %v165 = vld [vmem:[#allocation3 + $0x110] sm:$0xff]
    %v166 = vld [vmem:[#allocation3 + $0x118] sm:$0xff]
    %v167 = vld [vmem:[#allocation3 + $0x120] sm:$0xff]
    %v168 = vld [vmem:[#allocation3 + $0x128] sm:$0xff]
    %v169 = vld [vmem:[#allocation3 + $0x130] sm:$0xff]
    %v170 = vld [vmem:[#allocation3 + $0x138] sm:$0xff]
    %v171 = vld [vmem:[#allocation3 + $0x140] sm:$0xff]
    %v172 = vld [vmem:[#allocation3 + $0x148] sm:$0xff]
    %v173 = vld [vmem:[#allocation3 + $0x150] sm:$0xff]
    %v174 = vld [vmem:[#allocation3 + $0x158] sm:$0xff]
    %v175 = vld [vmem:[#allocation3 + $0x160] sm:$0xff]
    %v176 = vld [vmem:[#allocation3 + $0x168] sm:$0xff]
    %v177 = vld [vmem:[#allocation3 + $0x170] sm:$0xff]
    %v178 = vld [vmem:[#allocation3 + $0x178] sm:$0xff]
    %v179 = vld [vmem:[#allocation3 + $0x180] sm:$0xff]
    %v180 = vld [vmem:[#allocation3 + $0x188] sm:$0xff]
    %v181 = vld [vmem:[#allocation3 + $0x190] sm:$0xff]
    %v182 = vld [vmem:[#allocation3 + $0x198] sm:$0xff]
    %v183 = vld [vmem:[#allocation3 + $0x1a0] sm:$0xff]
    %v184 = vld [vmem:[#allocation3 + $0x1a8] sm:$0xff]
    %v185 = vld [vmem:[#allocation3 + $0x1b0] sm:$0xff]
    %v186 = vld [vmem:[#allocation3 + $0x1b8] sm:$0xff]
    %v187 = vld [vmem:[#allocation3 + $0x1c0] sm:$0xff]
    %v188 = vld [vmem:[#allocation3 + $0x1c8] sm:$0xff]
    %v189 = vld [vmem:[#allocation3 + $0x1d0] sm:$0xff]
    %v190 = vld [vmem:[#allocation3 + $0x1d8] sm:$0xff]
    %v191 = vld [vmem:[#allocation3 + $0x1e0] sm:$0xff]
    %v192 = vld [vmem:[#allocation3 + $0x1e8] sm:$0xff]
    %v193 = vld [vmem:[#allocation3 + $0x1f0] sm:$0xff]
    %v194 = vld [vmem:[#allocation3 + $0x1f8] sm:$0xff]
    %v195 = vpack.c.bf16 %v132, %v131
    %v196 = vpack.c.bf16 %v134, %v133
    %v197 = vpack.c.bf16 %v136, %v135
    %v198 = vpack.c.bf16 %v138, %v137
    %v199 = vpack.c.bf16 %v140, %v139
    %v200 = vpack.c.bf16 %v142, %v141
    %v201 = vpack.c.bf16 %v144, %v143
    %v202 = vpack.c.bf16 %v146, %v145
    %v203 = vpack.c.bf16 %v148, %v147
    %v204 = vpack.c.bf16 %v150, %v149
    %v205 = vpack.c.bf16 %v152, %v151
    %v206 = vpack.c.bf16 %v154, %v153
    %v207 = vpack.c.bf16 %v156, %v155
    %v208 = vpack.c.bf16 %v158, %v157
    %v209 = vpack.c.bf16 %v160, %v159
    %v210 = vpack.c.bf16 %v162, %v161
    %v211 = vpack.c.bf16 %v164, %v163
    %v212 = vpack.c.bf16 %v166, %v165
    %v213 = vpack.c.bf16 %v168, %v167
    %v214 = vpack.c.bf16 %v170, %v169
    %v215 = vpack.c.bf16 %v172, %v171
    %v216 = vpack.c.bf16 %v174, %v173
    %v217 = vpack.c.bf16 %v176, %v175
    %v218 = vpack.c.bf16 %v178, %v177
    %v219 = vpack.c.bf16 %v180, %v179
    %v220 = vpack.c.bf16 %v182, %v181
    %v221 = vpack.c.bf16 %v184, %v183
    %v222 = vpack.c.bf16 %v186, %v185
    %v223 = vpack.c.bf16 %v188, %v187
    %v224 = vpack.c.bf16 %v190, %v189
    %v225 = vpack.c.bf16 %v192, %v191
    %v226 = vpack.c.bf16 %v194, %v193
    %v227 = vld [vmem:[#allocation6] sm:$0xff]
    %v228 = vld [vmem:[#allocation6 + $0x8] sm:$0xff]
    %v229 = vld [vmem:[#allocation6 + $0x10] sm:$0xff]
    %v230 = vld [vmem:[#allocation6 + $0x18] sm:$0xff]
    %v231 = vld [vmem:[#allocation6 + $0x20] sm:$0xff]
    %v232 = vld [vmem:[#allocation6 + $0x28] sm:$0xff]
    %v233 = vld [vmem:[#allocation6 + $0x30] sm:$0xff]
    %v234 = vld [vmem:[#allocation6 + $0x38] sm:$0xff]
    %v235 = vld [vmem:[#allocation6 + $0x40] sm:$0xff]
    %v236 = vld [vmem:[#allocation6 + $0x48] sm:$0xff]
    %v237 = vld [vmem:[#allocation6 + $0x50] sm:$0xff]
    %v238 = vld [vmem:[#allocation6 + $0x58] sm:$0xff]
    %v239 = vld [vmem:[#allocation6 + $0x60] sm:$0xff]
    %v240 = vld [vmem:[#allocation6 + $0x68] sm:$0xff]
    %v241 = vld [vmem:[#allocation6 + $0x70] sm:$0xff]
    %v242 = vld [vmem:[#allocation6 + $0x78] sm:$0xff]
    %v243 = vld [vmem:[%s2] sm:$0x3]
    %v245 = vlaneseq
    %v246 = vshrl.u32 %v245, 7
    %v247 = vsub.s32 0, %v246
    %v248 = vrot.slane %v243, %v247
    %v249 = vlaneseq
    %v250 = vshrl.u32 %v249, 7
    %v251 = vsub.s32 1, %v250
    %v252 = vrot.slane %v243, %v251
    %v271 = vunpack.c.l.b16 %v227
    %v272 = vunpack.c.h.b16 %v227
    %v273 = vunpack.c.l.b16 %v228
    %v274 = vunpack.c.h.b16 %v228
    %v275 = vunpack.c.l.b16 %v229
    %v276 = vunpack.c.h.b16 %v229
    %v277 = vunpack.c.l.b16 %v230
    %v278 = vunpack.c.h.b16 %v230
    %v279 = vunpack.c.l.b16 %v231
    %v280 = vunpack.c.h.b16 %v231
    %v281 = vunpack.c.l.b16 %v232
    %v282 = vunpack.c.h.b16 %v232
    %v283 = vunpack.c.l.b16 %v233
    %v284 = vunpack.c.h.b16 %v233
    %v285 = vunpack.c.l.b16 %v234
    %v286 = vunpack.c.h.b16 %v234
    %v287 = vunpack.c.l.b16 %v235
    %v288 = vunpack.c.h.b16 %v235
    %v289 = vunpack.c.l.b16 %v236
    %v290 = vunpack.c.h.b16 %v236
    %v291 = vunpack.c.l.b16 %v237
    %v292 = vunpack.c.h.b16 %v237
    %v293 = vunpack.c.l.b16 %v238
    %v294 = vunpack.c.h.b16 %v238
    %v295 = vunpack.c.l.b16 %v239
    %v296 = vunpack.c.h.b16 %v239
    %v297 = vunpack.c.l.b16 %v240
    %v298 = vunpack.c.h.b16 %v240
    %v299 = vunpack.c.l.b16 %v241
    %v300 = vunpack.c.h.b16 %v241
    %v301 = vunpack.c.l.b16 %v242
    %v302 = vunpack.c.h.b16 %v242
    %v303 = vpack.c.b16 %v273, %v271
    %v304 = vpack.c.b16 %v274, %v272
    %v305 = vpack.c.b16 %v277, %v275
    %v306 = vpack.c.b16 %v278, %v276
    %v307 = vpack.c.b16 %v281, %v279
    %v308 = vpack.c.b16 %v282, %v280
    %v309 = vpack.c.b16 %v285, %v283
    %v310 = vpack.c.b16 %v286, %v284
    %v311 = vpack.c.b16 %v289, %v287
    %v312 = vpack.c.b16 %v290, %v288
    %v313 = vpack.c.b16 %v293, %v291
    %v314 = vpack.c.b16 %v294, %v292
    %v315 = vpack.c.b16 %v297, %v295
    %v316 = vpack.c.b16 %v298, %v296
    %v317 = vpack.c.b16 %v301, %v299
    %v318 = vpack.c.b16 %v302, %v300
    %335 = vmatprep.subr.bf16.mxu0 %v304
    %336 = vmatpush1.bf16.msra.mxu0 %v303
    %337 = vmatprep.subr.bf16.mxu0 %v306
    %338 = vmatpush1.bf16.msra.mxu0 %v305
    %339 = vmatprep.subr.bf16.mxu0 %v308
    %340 = vmatpush1.bf16.msra.mxu0 %v307
    %341 = vmatprep.subr.bf16.mxu0 %v310
    %342 = vmatpush1.bf16.msra.mxu0 %v309
    %343 = vmatprep.subr.bf16.mxu0 %v312
    %344 = vmatpush1.bf16.msra.mxu0 %v311
    %345 = vmatprep.subr.bf16.mxu0 %v314
    %346 = vmatpush1.bf16.msra.mxu0 %v313
    %347 = vmatprep.subr.bf16.mxu0 %v316
    %348 = vmatpush1.bf16.msra.mxu0 %v315
    %349 = vmatprep.subr.bf16.mxu0 %v318
    %350 = vmatpush1.bf16.msra.mxu0 %v317
    %351 = vmatprep.subr.bf16.mxu0 0
    %352 = vmatpush1.bf16.msra.mxu0 0
    %353 = vmatprep.subr.bf16.mxu0 0
    %354 = vmatpush1.bf16.msra.mxu0 0
    %355 = vmatprep.subr.bf16.mxu0 0
    %356 = vmatpush1.bf16.msra.mxu0 0
    %357 = vmatprep.subr.bf16.mxu0 0
    %358 = vmatpush1.bf16.msra.mxu0 0
    %359 = vmatprep.subr.bf16.mxu0 0
    %360 = vmatpush1.bf16.msra.mxu0 0
    %361 = vmatprep.subr.bf16.mxu0 0
    %362 = vmatpush1.bf16.msra.mxu0 0
    %363 = vmatprep.subr.bf16.mxu0 0
    %364 = vmatpush1.bf16.msra.mxu0 0
    %365 = vmatprep.subr.bf16.mxu0 0
    %366 = vmatpush1.bf16.msra.mxu0 0
    %367 = vmatprep.mubr.bf16.mxu0 0
    %368 = vmatmul.mubr.bf16.gmra.mrb[0].mxu0 %v195
    %v369 = vpop.f32.mrb[0].mxu0
    %v370 = vadd.f32 %v248, %v369
    %v371 = vpop.f32.mrb[0].mxu0
    %v372 = vadd.f32 %v252, %v371
    %v373 = vpop.f32.mrb[0].mxu0
    %v374 = vadd.f32 %v248, %v373
    %v375 = vpop.f32.mrb[0].mxu0
    %v376 = vadd.f32 %v252, %v375
    %377 = vmatprep.mubr.bf16.mxu0 0
    %378 = vmatmul.mubr.bf16.gmra.mrb[0].mxu0 %v196
    %v379 = vpop.f32.mrb[0].mxu0
    %v380 = vadd.f32 %v248, %v379
    %v381 = vpop.f32.mrb[0].mxu0
    %v382 = vadd.f32 %v252, %v381
    %v383 = vpop.f32.mrb[0].mxu0
    %v384 = vadd.f32 %v248, %v383
    %v385 = vpop.f32.mrb[0].mxu0
    %v386 = vadd.f32 %v252, %v385
    %387 = vmatprep.mubr.bf16.mxu0 0
    %388 = vmatmul.mubr.bf16.gmra.mrb[0].mxu0 %v197
    %v389 = vpop.f32.mrb[0].mxu0
    %v390 = vadd.f32 %v248, %v389
    %v391 = vpop.f32.mrb[0].mxu0
    %v392 = vadd.f32 %v252, %v391
    %v393 = vpop.f32.mrb[0].mxu0
    %v394 = vadd.f32 %v248, %v393
    %v395 = vpop.f32.mrb[0].mxu0
    %v396 = vadd.f32 %v252, %v395
    %397 = vmatprep.mubr.bf16.mxu0 0
    %398 = vmatmul.mubr.bf16.gmra.mrb[0].mxu0 %v198
    %v399 = vpop.f32.mrb[0].mxu0
    %v400 = vadd.f32 %v248, %v399
    %v401 = vpop.f32.mrb[0].mxu0
    %v402 = vadd.f32 %v252, %v401
    %v403 = vpop.f32.mrb[0].mxu0
    %v404 = vadd.f32 %v248, %v403
    %v405 = vpop.f32.mrb[0].mxu0
    %v406 = vadd.f32 %v252, %v405
    %407 = vmatprep.mubr.bf16.mxu0 0
    %408 = vmatmul.mubr.bf16.gmra.mrb[0].mxu0 %v199
    %v409 = vpop.f32.mrb[0].mxu0
    %v410 = vadd.f32 %v248, %v409
    %v411 = vpop.f32.mrb[0].mxu0
    %v412 = vadd.f32 %v252, %v411
    %v413 = vpop.f32.mrb[0].mxu0
    %v414 = vadd.f32 %v248, %v413
    %v415 = vpop.f32.mrb[0].mxu0
    %v416 = vadd.f32 %v252, %v415
    %417 = vmatprep.mubr.bf16.mxu0 0
    %418 = vmatmul.mubr.bf16.gmra.mrb[0].mxu0 %v200
    %v419 = vpop.f32.mrb[0].mxu0
    %v420 = vadd.f32 %v248, %v419
    %v421 = vpop.f32.mrb[0].mxu0
    %v422 = vadd.f32 %v252, %v421
    %v423 = vpop.f32.mrb[0].mxu0
    %v424 = vadd.f32 %v248, %v423
    %v425 = vpop.f32.mrb[0].mxu0
    %v426 = vadd.f32 %v252, %v425
    %427 = vmatprep.mubr.bf16.mxu0 0
    %428 = vmatmul.mubr.bf16.gmra.mrb[0].mxu0 %v201
    %v429 = vpop.f32.mrb[0].mxu0
    %v430 = vadd.f32 %v248, %v429
    %v431 = vpop.f32.mrb[0].mxu0
    %v432 = vadd.f32 %v252, %v431
    %v433 = vpop.f32.mrb[0].mxu0
    %v434 = vadd.f32 %v248, %v433
    %v435 = vpop.f32.mrb[0].mxu0
    %v436 = vadd.f32 %v252, %v435
    %437 = vmatprep.mubr.bf16.mxu0 0
    %438 = vmatmul.mubr.bf16.gmra.mrb[0].mxu0 %v202
    %v439 = vpop.f32.mrb[0].mxu0
    %v440 = vadd.f32 %v248, %v439
    %v441 = vpop.f32.mrb[0].mxu0
    %v442 = vadd.f32 %v252, %v441
    %v443 = vpop.f32.mrb[0].mxu0
    %v444 = vadd.f32 %v248, %v443
    %v445 = vpop.f32.mrb[0].mxu0
    %v446 = vadd.f32 %v252, %v445
    %447 = vmatprep.mubr.bf16.mxu0 0
    %448 = vmatmul.mubr.bf16.gmra.mrb[0].mxu0 %v203
    %v449 = vpop.f32.mrb[0].mxu0
    %v450 = vadd.f32 %v248, %v449
    %v451 = vpop.f32.mrb[0].mxu0
    %v452 = vadd.f32 %v252, %v451
    %v453 = vpop.f32.mrb[0].mxu0
    %v454 = vadd.f32 %v248, %v453
    %v455 = vpop.f32.mrb[0].mxu0
    %v456 = vadd.f32 %v252, %v455
    %457 = vmatprep.mubr.bf16.mxu0 0
    %458 = vmatmul.mubr.bf16.gmra.mrb[0].mxu0 %v204
    %v459 = vpop.f32.mrb[0].mxu0
    %v460 = vadd.f32 %v248, %v459
    %v461 = vpop.f32.mrb[0].mxu0
    %v462 = vadd.f32 %v252, %v461
    %v463 = vpop.f32.mrb[0].mxu0
    %v464 = vadd.f32 %v248, %v463
    %v465 = vpop.f32.mrb[0].mxu0
    %v466 = vadd.f32 %v252, %v465
    %467 = vmatprep.mubr.bf16.mxu0 0
    %468 = vmatmul.mubr.bf16.gmra.mrb[0].mxu0 %v205
    %v469 = vpop.f32.mrb[0].mxu0
    %v470 = vadd.f32 %v248, %v469
    %v471 = vpop.f32.mrb[0].mxu0
    %v472 = vadd.f32 %v252, %v471
    %v473 = vpop.f32.mrb[0].mxu0
    %v474 = vadd.f32 %v248, %v473
    %v475 = vpop.f32.mrb[0].mxu0
    %v476 = vadd.f32 %v252, %v475
    %477 = vmatprep.mubr.bf16.mxu0 0
    %478 = vmatmul.mubr.bf16.gmra.mrb[0].mxu0 %v206
    %v479 = vpop.f32.mrb[0].mxu0
    %v480 = vadd.f32 %v248, %v479
    %v481 = vpop.f32.mrb[0].mxu0
    %v482 = vadd.f32 %v252, %v481
    %v483 = vpop.f32.mrb[0].mxu0
    %v484 = vadd.f32 %v248, %v483
    %v485 = vpop.f32.mrb[0].mxu0
    %v486 = vadd.f32 %v252, %v485
    %487 = vmatprep.mubr.bf16.mxu0 0
    %488 = vmatmul.mubr.bf16.gmra.mrb[0].mxu0 %v207
    %v489 = vpop.f32.mrb[0].mxu0
    %v490 = vadd.f32 %v248, %v489
    %v491 = vpop.f32.mrb[0].mxu0
    %v492 = vadd.f32 %v252, %v491
    %v493 = vpop.f32.mrb[0].mxu0
    %v494 = vadd.f32 %v248, %v493
    %v495 = vpop.f32.mrb[0].mxu0
    %v496 = vadd.f32 %v252, %v495
    %497 = vmatprep.mubr.bf16.mxu0 0
    %498 = vmatmul.mubr.bf16.gmra.mrb[0].mxu0 %v208
    %v499 = vpop.f32.mrb[0].mxu0
    %v500 = vadd.f32 %v248, %v499
    %v501 = vpop.f32.mrb[0].mxu0
    %v502 = vadd.f32 %v252, %v501
    %v503 = vpop.f32.mrb[0].mxu0
    %v504 = vadd.f32 %v248, %v503
    %v505 = vpop.f32.mrb[0].mxu0
    %v506 = vadd.f32 %v252, %v505
    %507 = vmatprep.mubr.bf16.mxu0 0
    %508 = vmatmul.mubr.bf16.gmra.mrb[0].mxu0 %v209
    %v509 = vpop.f32.mrb[0].mxu0
    %v510 = vadd.f32 %v248, %v509
    %v511 = vpop.f32.mrb[0].mxu0
    %v512 = vadd.f32 %v252, %v511
    %v513 = vpop.f32.mrb[0].mxu0
    %v514 = vadd.f32 %v248, %v513
    %v515 = vpop.f32.mrb[0].mxu0
    %v516 = vadd.f32 %v252, %v515
    %517 = vmatprep.mubr.bf16.mxu0 0
    %518 = vmatmul.mubr.bf16.gmra.mrb[0].mxu0 %v210
    %v519 = vpop.f32.mrb[0].mxu0
    %v520 = vadd.f32 %v248, %v519
    %v521 = vpop.f32.mrb[0].mxu0
    %v522 = vadd.f32 %v252, %v521
    %v523 = vpop.f32.mrb[0].mxu0
    %v524 = vadd.f32 %v248, %v523
    %v525 = vpop.f32.mrb[0].mxu0
    %v526 = vadd.f32 %v252, %v525
    %527 = vmatprep.mubr.bf16.mxu0 0
    %528 = vmatmul.mubr.bf16.gmra.mrb[0].mxu0 %v211
    %v529 = vpop.f32.mrb[0].mxu0
    %v530 = vadd.f32 %v248, %v529
    %v531 = vpop.f32.mrb[0].mxu0
    %v532 = vadd.f32 %v252, %v531
    %v533 = vpop.f32.mrb[0].mxu0
    %v534 = vadd.f32 %v248, %v533
    %v535 = vpop.f32.mrb[0].mxu0
    %v536 = vadd.f32 %v252, %v535
    %537 = vmatprep.mubr.bf16.mxu0 0
    %538 = vmatmul.mubr.bf16.gmra.mrb[0].mxu0 %v212
    %v539 = vpop.f32.mrb[0].mxu0
    %v540 = vadd.f32 %v248, %v539
    %v541 = vpop.f32.mrb[0].mxu0
    %v542 = vadd.f32 %v252, %v541
    %v543 = vpop.f32.mrb[0].mxu0
    %v544 = vadd.f32 %v248, %v543
    %v545 = vpop.f32.mrb[0].mxu0
    %v546 = vadd.f32 %v252, %v545
    %547 = vmatprep.mubr.bf16.mxu0 0
    %548 = vmatmul.mubr.bf16.gmra.mrb[0].mxu0 %v213
    %v549 = vpop.f32.mrb[0].mxu0
    %v550 = vadd.f32 %v248, %v549
    %v551 = vpop.f32.mrb[0].mxu0
    %v552 = vadd.f32 %v252, %v551
    %v553 = vpop.f32.mrb[0].mxu0
    %v554 = vadd.f32 %v248, %v553
    %v555 = vpop.f32.mrb[0].mxu0
    %v556 = vadd.f32 %v252, %v555
    %557 = vmatprep.mubr.bf16.mxu0 0
    %558 = vmatmul.mubr.bf16.gmra.mrb[0].mxu0 %v214
    %v559 = vpop.f32.mrb[0].mxu0
    %v560 = vadd.f32 %v248, %v559
    %v561 = vpop.f32.mrb[0].mxu0
    %v562 = vadd.f32 %v252, %v561
    %v563 = vpop.f32.mrb[0].mxu0
    %v564 = vadd.f32 %v248, %v563
    %v565 = vpop.f32.mrb[0].mxu0
    %v566 = vadd.f32 %v252, %v565
    %567 = vmatprep.mubr.bf16.mxu0 0
    %568 = vmatmul.mubr.bf16.gmra.mrb[0].mxu0 %v215
    %v569 = vpop.f32.mrb[0].mxu0
    %v570 = vadd.f32 %v248, %v569
    %v571 = vpop.f32.mrb[0].mxu0
    %v572 = vadd.f32 %v252, %v571
    %v573 = vpop.f32.mrb[0].mxu0
    %v574 = vadd.f32 %v248, %v573
    %v575 = vpop.f32.mrb[0].mxu0
    %v576 = vadd.f32 %v252, %v575
    %577 = vmatprep.mubr.bf16.mxu0 0
    %578 = vmatmul.mubr.bf16.gmra.mrb[0].mxu0 %v216
    %v579 = vpop.f32.mrb[0].mxu0
    %v580 = vadd.f32 %v248, %v579
    %v581 = vpop.f32.mrb[0].mxu0
    %v582 = vadd.f32 %v252, %v581
    %v583 = vpop.f32.mrb[0].mxu0
    %v584 = vadd.f32 %v248, %v583
    %v585 = vpop.f32.mrb[0].mxu0
    %v586 = vadd.f32 %v252, %v585
    %587 = vmatprep.mubr.bf16.mxu0 0
    %588 = vmatmul.mubr.bf16.gmra.mrb[0].mxu0 %v217
    %v589 = vpop.f32.mrb[0].mxu0
    %v590 = vadd.f32 %v248, %v589
    %v591 = vpop.f32.mrb[0].mxu0
    %v592 = vadd.f32 %v252, %v591
    %v593 = vpop.f32.mrb[0].mxu0
    %v594 = vadd.f32 %v248, %v593
    %v595 = vpop.f32.mrb[0].mxu0
    %v596 = vadd.f32 %v252, %v595
    %597 = vmatprep.mubr.bf16.mxu0 0
    %598 = vmatmul.mubr.bf16.gmra.mrb[0].mxu0 %v218
    %v599 = vpop.f32.mrb[0].mxu0
    %v600 = vadd.f32 %v248, %v599
    %v601 = vpop.f32.mrb[0].mxu0
    %v602 = vadd.f32 %v252, %v601
    %v603 = vpop.f32.mrb[0].mxu0
    %v604 = vadd.f32 %v248, %v603
    %v605 = vpop.f32.mrb[0].mxu0
    %v606 = vadd.f32 %v252, %v605
    %607 = vmatprep.mubr.bf16.mxu0 0
    %608 = vmatmul.mubr.bf16.gmra.mrb[0].mxu0 %v219
    %v609 = vpop.f32.mrb[0].mxu0
    %v610 = vadd.f32 %v248, %v609
    %v611 = vpop.f32.mrb[0].mxu0
    %v612 = vadd.f32 %v252, %v611
    %v613 = vpop.f32.mrb[0].mxu0
    %v614 = vadd.f32 %v248, %v613
    %v615 = vpop.f32.mrb[0].mxu0
    %v616 = vadd.f32 %v252, %v615
    %617 = vmatprep.mubr.bf16.mxu0 0
    %618 = vmatmul.mubr.bf16.gmra.mrb[0].mxu0 %v220
    %v619 = vpop.f32.mrb[0].mxu0
    %v620 = vadd.f32 %v248, %v619
    %v621 = vpop.f32.mrb[0].mxu0
    %v622 = vadd.f32 %v252, %v621
    %v623 = vpop.f32.mrb[0].mxu0
    %v624 = vadd.f32 %v248, %v623
    %v625 = vpop.f32.mrb[0].mxu0
    %v626 = vadd.f32 %v252, %v625
    %627 = vmatprep.mubr.bf16.mxu0 0
    %628 = vmatmul.mubr.bf16.gmra.mrb[0].mxu0 %v221
    %v629 = vpop.f32.mrb[0].mxu0
    %v630 = vadd.f32 %v248, %v629
    %v631 = vpop.f32.mrb[0].mxu0
    %v632 = vadd.f32 %v252, %v631
    %v633 = vpop.f32.mrb[0].mxu0
    %v634 = vadd.f32 %v248, %v633
    %v635 = vpop.f32.mrb[0].mxu0
    %v636 = vadd.f32 %v252, %v635
    %637 = vmatprep.mubr.bf16.mxu0 0
    %638 = vmatmul.mubr.bf16.gmra.mrb[0].mxu0 %v222
    %v639 = vpop.f32.mrb[0].mxu0
    %v640 = vadd.f32 %v248, %v639
    %v641 = vpop.f32.mrb[0].mxu0
    %v642 = vadd.f32 %v252, %v641
    %v643 = vpop.f32.mrb[0].mxu0
    %v644 = vadd.f32 %v248, %v643
    %v645 = vpop.f32.mrb[0].mxu0
    %v646 = vadd.f32 %v252, %v645
    %647 = vmatprep.mubr.bf16.mxu0 0
    %648 = vmatmul.mubr.bf16.gmra.mrb[0].mxu0 %v223
    %v649 = vpop.f32.mrb[0].mxu0
    %v650 = vadd.f32 %v248, %v649
    %v651 = vpop.f32.mrb[0].mxu0
    %v652 = vadd.f32 %v252, %v651
    %v653 = vpop.f32.mrb[0].mxu0
    %v654 = vadd.f32 %v248, %v653
    %v655 = vpop.f32.mrb[0].mxu0
    %v656 = vadd.f32 %v252, %v655
    %657 = vmatprep.mubr.bf16.mxu0 0
    %658 = vmatmul.mubr.bf16.gmra.mrb[0].mxu0 %v224
    %v659 = vpop.f32.mrb[0].mxu0
    %v660 = vadd.f32 %v248, %v659
    %v661 = vpop.f32.mrb[0].mxu0
    %v662 = vadd.f32 %v252, %v661
    %v663 = vpop.f32.mrb[0].mxu0
    %v664 = vadd.f32 %v248, %v663
    %v665 = vpop.f32.mrb[0].mxu0
    %v666 = vadd.f32 %v252, %v665
    %667 = vmatprep.mubr.bf16.mxu0 0
    %668 = vmatmul.mubr.bf16.gmra.mrb[0].mxu0 %v225
    %v669 = vpop.f32.mrb[0].mxu0
    %v670 = vadd.f32 %v248, %v669
    %v671 = vpop.f32.mrb[0].mxu0
    %v672 = vadd.f32 %v252, %v671
    %v673 = vpop.f32.mrb[0].mxu0
    %v674 = vadd.f32 %v248, %v673
    %v675 = vpop.f32.mrb[0].mxu0
    %v676 = vadd.f32 %v252, %v675
    %677 = vmatprep.mubr.bf16.mxu0 0
    %678 = vmatmul.mubr.bf16.gmra.mrb[0].mxu0 %v226
    %v679 = vpop.f32.mrb[0].mxu0
    %v680 = vadd.f32 %v248, %v679
    %v681 = vpop.f32.mrb[0].mxu0
    %v682 = vadd.f32 %v252, %v681
    %v683 = vpop.f32.mrb[0].mxu0
    %v684 = vadd.f32 %v248, %v683
    %v685 = vpop.f32.mrb[0].mxu0
    %v686 = vadd.f32 %v252, %v685
    %687 = vdwg.mxu0
    %v688 = vmul.f32 %v370, %v370
    %v689 = vmul.f32 %v372, %v372
    %v690 = vmul.f32 %v374, %v374
    %v691 = vmul.f32 %v376, %v376
    %v692 = vmul.f32 %v380, %v380
    %v693 = vmul.f32 %v382, %v382
    %v694 = vmul.f32 %v384, %v384
    %v695 = vmul.f32 %v386, %v386
    %v696 = vmul.f32 %v390, %v390
    %v697 = vmul.f32 %v392, %v392
    %v698 = vmul.f32 %v394, %v394
    %v699 = vmul.f32 %v396, %v396
    %v700 = vmul.f32 %v400, %v400
    %v701 = vmul.f32 %v402, %v402
    %v702 = vmul.f32 %v404, %v404
    %v703 = vmul.f32 %v406, %v406
    %v704 = vmul.f32 %v410, %v410
    %v705 = vmul.f32 %v412, %v412
    %v706 = vmul.f32 %v414, %v414
    %v707 = vmul.f32 %v416, %v416
    %v708 = vmul.f32 %v420, %v420
    %v709 = vmul.f32 %v422, %v422
    %v710 = vmul.f32 %v424, %v424
    %v711 = vmul.f32 %v426, %v426
    %v712 = vmul.f32 %v430, %v430
    %v713 = vmul.f32 %v432, %v432
    %v714 = vmul.f32 %v434, %v434
    %v715 = vmul.f32 %v436, %v436
    %v716 = vmul.f32 %v440, %v440
    %v717 = vmul.f32 %v442, %v442
    %v718 = vmul.f32 %v444, %v444
    %v719 = vmul.f32 %v446, %v446
    %v720 = vmul.f32 %v450, %v450
    %v721 = vmul.f32 %v452, %v452
    %v722 = vmul.f32 %v454, %v454
    %v723 = vmul.f32 %v456, %v456
    %v724 = vmul.f32 %v460, %v460
    %v725 = vmul.f32 %v462, %v462
    %v726 = vmul.f32 %v464, %v464
    %v727 = vmul.f32 %v466, %v466
    %v728 = vmul.f32 %v470, %v470
    %v729 = vmul.f32 %v472, %v472
    %v730 = vmul.f32 %v474, %v474
    %v731 = vmul.f32 %v476, %v476
    %v732 = vmul.f32 %v480, %v480
    %v733 = vmul.f32 %v482, %v482
    %v734 = vmul.f32 %v484, %v484
    %v735 = vmul.f32 %v486, %v486
    %v736 = vmul.f32 %v490, %v490
    %v737 = vmul.f32 %v492, %v492
    %v738 = vmul.f32 %v494, %v494
    %v739 = vmul.f32 %v496, %v496
    %v740 = vmul.f32 %v500, %v500
    %v741 = vmul.f32 %v502, %v502
    %v742 = vmul.f32 %v504, %v504
    %v743 = vmul.f32 %v506, %v506
    %v744 = vmul.f32 %v510, %v510
    %v745 = vmul.f32 %v512, %v512
    %v746 = vmul.f32 %v514, %v514
    %v747 = vmul.f32 %v516, %v516
    %v748 = vmul.f32 %v520, %v520
    %v749 = vmul.f32 %v522, %v522
    %v750 = vmul.f32 %v524, %v524
    %v751 = vmul.f32 %v526, %v526
    %v752 = vmul.f32 %v530, %v530
    %v753 = vmul.f32 %v532, %v532
    %v754 = vmul.f32 %v534, %v534
    %v755 = vmul.f32 %v536, %v536
    %v756 = vmul.f32 %v540, %v540
    %v757 = vmul.f32 %v542, %v542
    %v758 = vmul.f32 %v544, %v544
    %v759 = vmul.f32 %v546, %v546
    %v760 = vmul.f32 %v550, %v550
    %v761 = vmul.f32 %v552, %v552
    %v762 = vmul.f32 %v554, %v554
    %v763 = vmul.f32 %v556, %v556
    %v764 = vmul.f32 %v560, %v560
    %v765 = vmul.f32 %v562, %v562
    %v766 = vmul.f32 %v564, %v564
    %v767 = vmul.f32 %v566, %v566
    %v768 = vmul.f32 %v570, %v570
    %v769 = vmul.f32 %v572, %v572
    %v770 = vmul.f32 %v574, %v574
    %v771 = vmul.f32 %v576, %v576
    %v772 = vmul.f32 %v580, %v580
    %v773 = vmul.f32 %v582, %v582
    %v774 = vmul.f32 %v584, %v584
    %v775 = vmul.f32 %v586, %v586
    %v776 = vmul.f32 %v590, %v590
    %v777 = vmul.f32 %v592, %v592
    %v778 = vmul.f32 %v594, %v594
    %v779 = vmul.f32 %v596, %v596
    %v780 = vmul.f32 %v600, %v600
    %v781 = vmul.f32 %v602, %v602
    %v782 = vmul.f32 %v604, %v604
    %v783 = vmul.f32 %v606, %v606
    %v784 = vmul.f32 %v610, %v610
    %v785 = vmul.f32 %v612, %v612
    %v786 = vmul.f32 %v614, %v614
    %v787 = vmul.f32 %v616, %v616
    %v788 = vmul.f32 %v620, %v620
    %v789 = vmul.f32 %v622, %v622
    %v790 = vmul.f32 %v624, %v624
    %v791 = vmul.f32 %v626, %v626
    %v792 = vmul.f32 %v630, %v630
    %v793 = vmul.f32 %v632, %v632
    %v794 = vmul.f32 %v634, %v634
    %v795 = vmul.f32 %v636, %v636
    %v796 = vmul.f32 %v640, %v640
    %v797 = vmul.f32 %v642, %v642
    %v798 = vmul.f32 %v644, %v644
    %v799 = vmul.f32 %v646, %v646
    %v800 = vmul.f32 %v650, %v650
    %v801 = vmul.f32 %v652, %v652
    %v802 = vmul.f32 %v654, %v654
    %v803 = vmul.f32 %v656, %v656
    %v804 = vmul.f32 %v660, %v660
    %v805 = vmul.f32 %v662, %v662
    %v806 = vmul.f32 %v664, %v664
    %v807 = vmul.f32 %v666, %v666
    %v808 = vmul.f32 %v670, %v670
    %v809 = vmul.f32 %v672, %v672
    %v810 = vmul.f32 %v674, %v674
    %v811 = vmul.f32 %v676, %v676
    %v812 = vmul.f32 %v680, %v680
    %v813 = vmul.f32 %v682, %v682
    %v814 = vmul.f32 %v684, %v684
    %v815 = vmul.f32 %v686, %v686
    %v816 = vmul.f32 %v370, %v688
    %v817 = vmul.f32 %v372, %v689
    %v818 = vmul.f32 %v374, %v690
    %v819 = vmul.f32 %v376, %v691
    %v820 = vmul.f32 %v380, %v692
    %v821 = vmul.f32 %v382, %v693
    %v822 = vmul.f32 %v384, %v694
    %v823 = vmul.f32 %v386, %v695
    %v824 = vmul.f32 %v390, %v696
    %v825 = vmul.f32 %v392, %v697
    %v826 = vmul.f32 %v394, %v698
    %v827 = vmul.f32 %v396, %v699
    %v828 = vmul.f32 %v400, %v700
    %v829 = vmul.f32 %v402, %v701
    %v830 = vmul.f32 %v404, %v702
    %v831 = vmul.f32 %v406, %v703
    %v832 = vmul.f32 %v410, %v704
    %v833 = vmul.f32 %v412, %v705
    %v834 = vmul.f32 %v414, %v706
    %v835 = vmul.f32 %v416, %v707
    %v836 = vmul.f32 %v420, %v708
    %v837 = vmul.f32 %v422, %v709
    %v838 = vmul.f32 %v424, %v710
    %v839 = vmul.f32 %v426, %v711
    %v840 = vmul.f32 %v430, %v712
    %v841 = vmul.f32 %v432, %v713
    %v842 = vmul.f32 %v434, %v714
    %v843 = vmul.f32 %v436, %v715
    %v844 = vmul.f32 %v440, %v716
    %v845 = vmul.f32 %v442, %v717
    %v846 = vmul.f32 %v444, %v718
    %v847 = vmul.f32 %v446, %v719
    %v848 = vmul.f32 %v450, %v720
    %v849 = vmul.f32 %v452, %v721
    %v850 = vmul.f32 %v454, %v722
    %v851 = vmul.f32 %v456, %v723
    %v852 = vmul.f32 %v460, %v724
    %v853 = vmul.f32 %v462, %v725
    %v854 = vmul.f32 %v464, %v726
    %v855 = vmul.f32 %v466, %v727
    %v856 = vmul.f32 %v470, %v728
    %v857 = vmul.f32 %v472, %v729
    %v858 = vmul.f32 %v474, %v730
    %v859 = vmul.f32 %v476, %v731
    %v860 = vmul.f32 %v480, %v732
    %v861 = vmul.f32 %v482, %v733
    %v862 = vmul.f32 %v484, %v734
    %v863 = vmul.f32 %v486, %v735
    %v864 = vmul.f32 %v490, %v736
    %v865 = vmul.f32 %v492, %v737
    %v866 = vmul.f32 %v494, %v738
    %v867 = vmul.f32 %v496, %v739
    %v868 = vmul.f32 %v500, %v740
    %v869 = vmul.f32 %v502, %v741
    %v870 = vmul.f32 %v504, %v742
    %v871 = vmul.f32 %v506, %v743
    %v872 = vmul.f32 %v510, %v744
    %v873 = vmul.f32 %v512, %v745
    %v874 = vmul.f32 %v514, %v746
    %v875 = vmul.f32 %v516, %v747
    %v876 = vmul.f32 %v520, %v748
    %v877 = vmul.f32 %v522, %v749
    %v878 = vmul.f32 %v524, %v750
    %v879 = vmul.f32 %v526, %v751
    %v880 = vmul.f32 %v530, %v752
    %v881 = vmul.f32 %v532, %v753
    %v882 = vmul.f32 %v534, %v754
    %v883 = vmul.f32 %v536, %v755
    %v884 = vmul.f32 %v540, %v756
    %v885 = vmul.f32 %v542, %v757
    %v886 = vmul.f32 %v544, %v758
    %v887 = vmul.f32 %v546, %v759
    %v888 = vmul.f32 %v550, %v760
    %v889 = vmul.f32 %v552, %v761
    %v890 = vmul.f32 %v554, %v762
    %v891 = vmul.f32 %v556, %v763
    %v892 = vmul.f32 %v560, %v764
    %v893 = vmul.f32 %v562, %v765
    %v894 = vmul.f32 %v564, %v766
    %v895 = vmul.f32 %v566, %v767
    %v896 = vmul.f32 %v570, %v768
    %v897 = vmul.f32 %v572, %v769
    %v898 = vmul.f32 %v574, %v770
    %v899 = vmul.f32 %v576, %v771
    %v900 = vmul.f32 %v580, %v772
    %v901 = vmul.f32 %v582, %v773
    %v902 = vmul.f32 %v584, %v774
    %v903 = vmul.f32 %v586, %v775
    %v904 = vmul.f32 %v590, %v776
    %v905 = vmul.f32 %v592, %v777
    %v906 = vmul.f32 %v594, %v778
    %v907 = vmul.f32 %v596, %v779
    %v908 = vmul.f32 %v600, %v780
    %v909 = vmul.f32 %v602, %v781
    %v910 = vmul.f32 %v604, %v782
    %v911 = vmul.f32 %v606, %v783
    %v912 = vmul.f32 %v610, %v784
    %v913 = vmul.f32 %v612, %v785
    %v914 = vmul.f32 %v614, %v786
    %v915 = vmul.f32 %v616, %v787
    %v916 = vmul.f32 %v620, %v788
    %v917 = vmul.f32 %v622, %v789
    %v918 = vmul.f32 %v624, %v790
    %v919 = vmul.f32 %v626, %v791
    %v920 = vmul.f32 %v630, %v792
    %v921 = vmul.f32 %v632, %v793
    %v922 = vmul.f32 %v634, %v794
    %v923 = vmul.f32 %v636, %v795
    %v924 = vmul.f32 %v640, %v796
    %v925 = vmul.f32 %v642, %v797
    %v926 = vmul.f32 %v644, %v798
    %v927 = vmul.f32 %v646, %v799
    %v928 = vmul.f32 %v650, %v800
    %v929 = vmul.f32 %v652, %v801
    %v930 = vmul.f32 %v654, %v802
    %v931 = vmul.f32 %v656, %v803
    %v932 = vmul.f32 %v660, %v804
    %v933 = vmul.f32 %v662, %v805
    %v934 = vmul.f32 %v664, %v806
    %v935 = vmul.f32 %v666, %v807
    %v936 = vmul.f32 %v670, %v808
    %v937 = vmul.f32 %v672, %v809
    %v938 = vmul.f32 %v674, %v810
    %v939 = vmul.f32 %v676, %v811
    %v940 = vmul.f32 %v680, %v812
    %v941 = vmul.f32 %v682, %v813
    %v942 = vmul.f32 %v684, %v814
    %v943 = vmul.f32 %v686, %v815
    %v944 = vmul.f32 %v816, 0.044715
    %v945 = vmul.f32 %v817, 0.044715
    %v946 = vmul.f32 %v818, 0.044715
    %v947 = vmul.f32 %v819, 0.044715
    %v948 = vmul.f32 %v820, 0.044715
    %v949 = vmul.f32 %v821, 0.044715
    %v950 = vmul.f32 %v822, 0.044715
    %v951 = vmul.f32 %v823, 0.044715
    %v952 = vmul.f32 %v824, 0.044715
    %v953 = vmul.f32 %v825, 0.044715
    %v954 = vmul.f32 %v826, 0.044715
    %v955 = vmul.f32 %v827, 0.044715
    %v956 = vmul.f32 %v828, 0.044715
    %v957 = vmul.f32 %v829, 0.044715
    %v958 = vmul.f32 %v830, 0.044715
    %v959 = vmul.f32 %v831, 0.044715
    %v960 = vmul.f32 %v832, 0.044715
    %v961 = vmul.f32 %v833, 0.044715
    %v962 = vmul.f32 %v834, 0.044715
    %v963 = vmul.f32 %v835, 0.044715
    %v964 = vmul.f32 %v836, 0.044715
    %v965 = vmul.f32 %v837, 0.044715
    %v966 = vmul.f32 %v838, 0.044715
    %v967 = vmul.f32 %v839, 0.044715
    %v968 = vmul.f32 %v840, 0.044715
    %v969 = vmul.f32 %v841, 0.044715
    %v970 = vmul.f32 %v842, 0.044715
    %v971 = vmul.f32 %v843, 0.044715
    %v972 = vmul.f32 %v844, 0.044715
    %v973 = vmul.f32 %v845, 0.044715
    %v974 = vmul.f32 %v846, 0.044715
    %v975 = vmul.f32 %v847, 0.044715
    %v976 = vmul.f32 %v848, 0.044715
    %v977 = vmul.f32 %v849, 0.044715
    %v978 = vmul.f32 %v850, 0.044715
    %v979 = vmul.f32 %v851, 0.044715
    %v980 = vmul.f32 %v852, 0.044715
    %v981 = vmul.f32 %v853, 0.044715
    %v982 = vmul.f32 %v854, 0.044715
    %v983 = vmul.f32 %v855, 0.044715
    %v984 = vmul.f32 %v856, 0.044715
    %v985 = vmul.f32 %v857, 0.044715
    %v986 = vmul.f32 %v858, 0.044715
    %v987 = vmul.f32 %v859, 0.044715
    %v988 = vmul.f32 %v860, 0.044715
    %v989 = vmul.f32 %v861, 0.044715
    %v990 = vmul.f32 %v862, 0.044715
    %v991 = vmul.f32 %v863, 0.044715
    %v992 = vmul.f32 %v864, 0.044715
    %v993 = vmul.f32 %v865, 0.044715
    %v994 = vmul.f32 %v866, 0.044715
    %v995 = vmul.f32 %v867, 0.044715
    %v996 = vmul.f32 %v868, 0.044715
    %v997 = vmul.f32 %v869, 0.044715
    %v998 = vmul.f32 %v870, 0.044715
    %v999 = vmul.f32 %v871, 0.044715
    %v1000 = vmul.f32 %v872, 0.044715
    %v1001 = vmul.f32 %v873, 0.044715
    %v1002 = vmul.f32 %v874, 0.044715
    %v1003 = vmul.f32 %v875, 0.044715
    %v1004 = vmul.f32 %v876, 0.044715
    %v1005 = vmul.f32 %v877, 0.044715
    %v1006 = vmul.f32 %v878, 0.044715
    %v1007 = vmul.f32 %v879, 0.044715
    %v1008 = vmul.f32 %v880, 0.044715
    %v1009 = vmul.f32 %v881, 0.044715
    %v1010 = vmul.f32 %v882, 0.044715
    %v1011 = vmul.f32 %v883, 0.044715
    %v1012 = vmul.f32 %v884, 0.044715
    %v1013 = vmul.f32 %v885, 0.044715
    %v1014 = vmul.f32 %v886, 0.044715
    %v1015 = vmul.f32 %v887, 0.044715
    %v1016 = vmul.f32 %v888, 0.044715
    %v1017 = vmul.f32 %v889, 0.044715
    %v1018 = vmul.f32 %v890, 0.044715
    %v1019 = vmul.f32 %v891, 0.044715
    %v1020 = vmul.f32 %v892, 0.044715
    %v1021 = vmul.f32 %v893, 0.044715
    %v1022 = vmul.f32 %v894, 0.044715
    %v1023 = vmul.f32 %v895, 0.044715
    %v1024 = vmul.f32 %v896, 0.044715
    %v1025 = vmul.f32 %v897, 0.044715
    %v1026 = vmul.f32 %v898, 0.044715
    %v1027 = vmul.f32 %v899, 0.044715
    %v1028 = vmul.f32 %v900, 0.044715
    %v1029 = vmul.f32 %v901, 0.044715
    %v1030 = vmul.f32 %v902, 0.044715
    %v1031 = vmul.f32 %v903, 0.044715
    %v1032 = vmul.f32 %v904, 0.044715
    %v1033 = vmul.f32 %v905, 0.044715
    %v1034 = vmul.f32 %v906, 0.044715
    %v1035 = vmul.f32 %v907, 0.044715
    %v1036 = vmul.f32 %v908, 0.044715
    %v1037 = vmul.f32 %v909, 0.044715
    %v1038 = vmul.f32 %v910, 0.044715
    %v1039 = vmul.f32 %v911, 0.044715
    %v1040 = vmul.f32 %v912, 0.044715
    %v1041 = vmul.f32 %v913, 0.044715
    %v1042 = vmul.f32 %v914, 0.044715
    %v1043 = vmul.f32 %v915, 0.044715
    %v1044 = vmul.f32 %v916, 0.044715
    %v1045 = vmul.f32 %v917, 0.044715
    %v1046 = vmul.f32 %v918, 0.044715
    %v1047 = vmul.f32 %v919, 0.044715
    %v1048 = vmul.f32 %v920, 0.044715
    %v1049 = vmul.f32 %v921, 0.044715
    %v1050 = vmul.f32 %v922, 0.044715
    %v1051 = vmul.f32 %v923, 0.044715
    %v1052 = vmul.f32 %v924, 0.044715
    %v1053 = vmul.f32 %v925, 0.044715
    %v1054 = vmul.f32 %v926, 0.044715
    %v1055 = vmul.f32 %v927, 0.044715
    %v1056 = vmul.f32 %v928, 0.044715
    %v1057 = vmul.f32 %v929, 0.044715
    %v1058 = vmul.f32 %v930, 0.044715
    %v1059 = vmul.f32 %v931, 0.044715
    %v1060 = vmul.f32 %v932, 0.044715
    %v1061 = vmul.f32 %v933, 0.044715
    %v1062 = vmul.f32 %v934, 0.044715
    %v1063 = vmul.f32 %v935, 0.044715
    %v1064 = vmul.f32 %v936, 0.044715
    %v1065 = vmul.f32 %v937, 0.044715
    %v1066 = vmul.f32 %v938, 0.044715
    %v1067 = vmul.f32 %v939, 0.044715
    %v1068 = vmul.f32 %v940, 0.044715
    %v1069 = vmul.f32 %v941, 0.044715
    %v1070 = vmul.f32 %v942, 0.044715
    %v1071 = vmul.f32 %v943, 0.044715
    %v1072 = vadd.f32 %v370, %v944
    %v1073 = vadd.f32 %v372, %v945
    %v1074 = vadd.f32 %v374, %v946
    %v1075 = vadd.f32 %v376, %v947
    %v1076 = vadd.f32 %v380, %v948
    %v1077 = vadd.f32 %v382, %v949
    %v1078 = vadd.f32 %v384, %v950
    %v1079 = vadd.f32 %v386, %v951
    %v1080 = vadd.f32 %v390, %v952
    %v1081 = vadd.f32 %v392, %v953
    %v1082 = vadd.f32 %v394, %v954
    %v1083 = vadd.f32 %v396, %v955
    %v1084 = vadd.f32 %v400, %v956
    %v1085 = vadd.f32 %v402, %v957
    %v1086 = vadd.f32 %v404, %v958
    %v1087 = vadd.f32 %v406, %v959
    %v1088 = vadd.f32 %v410, %v960
    %v1089 = vadd.f32 %v412, %v961
    %v1090 = vadd.f32 %v414, %v962
    %v1091 = vadd.f32 %v416, %v963
    %v1092 = vadd.f32 %v420, %v964
    %v1093 = vadd.f32 %v422, %v965
    %v1094 = vadd.f32 %v424, %v966
    %v1095 = vadd.f32 %v426, %v967
    %v1096 = vadd.f32 %v430, %v968
    %v1097 = vadd.f32 %v432, %v969
    %v1098 = vadd.f32 %v434, %v970
    %v1099 = vadd.f32 %v436, %v971
    %v1100 = vadd.f32 %v440, %v972
    %v1101 = vadd.f32 %v442, %v973
    %v1102 = vadd.f32 %v444, %v974
    %v1103 = vadd.f32 %v446, %v975
    %v1104 = vadd.f32 %v450, %v976
    %v1105 = vadd.f32 %v452, %v977
    %v1106 = vadd.f32 %v454, %v978
    %v1107 = vadd.f32 %v456, %v979
    %v1108 = vadd.f32 %v460, %v980
    %v1109 = vadd.f32 %v462, %v981
    %v1110 = vadd.f32 %v464, %v982
    %v1111 = vadd.f32 %v466, %v983
    %v1112 = vadd.f32 %v470, %v984
    %v1113 = vadd.f32 %v472, %v985
    %v1114 = vadd.f32 %v474, %v986
    %v1115 = vadd.f32 %v476, %v987
    %v1116 = vadd.f32 %v480, %v988
    %v1117 = vadd.f32 %v482, %v989
    %v1118 = vadd.f32 %v484, %v990
    %v1119 = vadd.f32 %v486, %v991
    %v1120 = vadd.f32 %v490, %v992
    %v1121 = vadd.f32 %v492, %v993
    %v1122 = vadd.f32 %v494, %v994
    %v1123 = vadd.f32 %v496, %v995
    %v1124 = vadd.f32 %v500, %v996
    %v1125 = vadd.f32 %v502, %v997
    %v1126 = vadd.f32 %v504, %v998
    %v1127 = vadd.f32 %v506, %v999
    %v1128 = vadd.f32 %v510, %v1000
    %v1129 = vadd.f32 %v512, %v1001
    %v1130 = vadd.f32 %v514, %v1002
    %v1131 = vadd.f32 %v516, %v1003
    %v1132 = vadd.f32 %v520, %v1004
    %v1133 = vadd.f32 %v522, %v1005
    %v1134 = vadd.f32 %v524, %v1006
    %v1135 = vadd.f32 %v526, %v1007
    %v1136 = vadd.f32 %v530, %v1008
    %v1137 = vadd.f32 %v532, %v1009
    %v1138 = vadd.f32 %v534, %v1010
    %v1139 = vadd.f32 %v536, %v1011
    %v1140 = vadd.f32 %v540, %v1012
    %v1141 = vadd.f32 %v542, %v1013
    %v1142 = vadd.f32 %v544, %v1014
    %v1143 = vadd.f32 %v546, %v1015
    %v1144 = vadd.f32 %v550, %v1016
    %v1145 = vadd.f32 %v552, %v1017
    %v1146 = vadd.f32 %v554, %v1018
    %v1147 = vadd.f32 %v556, %v1019
    %v1148 = vadd.f32 %v560, %v1020
    %v1149 = vadd.f32 %v562, %v1021
    %v1150 = vadd.f32 %v564, %v1022
    %v1151 = vadd.f32 %v566, %v1023
    %v1152 = vadd.f32 %v570, %v1024
    %v1153 = vadd.f32 %v572, %v1025
    %v1154 = vadd.f32 %v574, %v1026
    %v1155 = vadd.f32 %v576, %v1027
    %v1156 = vadd.f32 %v580, %v1028
    %v1157 = vadd.f32 %v582, %v1029
    %v1158 = vadd.f32 %v584, %v1030
    %v1159 = vadd.f32 %v586, %v1031
    %v1160 = vadd.f32 %v590, %v1032
    %v1161 = vadd.f32 %v592, %v1033
    %v1162 = vadd.f32 %v594, %v1034
    %v1163 = vadd.f32 %v596, %v1035
    %v1164 = vadd.f32 %v600, %v1036
    %v1165 = vadd.f32 %v602, %v1037
    %v1166 = vadd.f32 %v604, %v1038
    %v1167 = vadd.f32 %v606, %v1039
    %v1168 = vadd.f32 %v610, %v1040
    %v1169 = vadd.f32 %v612, %v1041
    %v1170 = vadd.f32 %v614, %v1042
    %v1171 = vadd.f32 %v616, %v1043
    %v1172 = vadd.f32 %v620, %v1044
    %v1173 = vadd.f32 %v622, %v1045
    %v1174 = vadd.f32 %v624, %v1046
    %v1175 = vadd.f32 %v626, %v1047
    %v1176 = vadd.f32 %v630, %v1048
    %v1177 = vadd.f32 %v632, %v1049
    %v1178 = vadd.f32 %v634, %v1050
    %v1179 = vadd.f32 %v636, %v1051
    %v1180 = vadd.f32 %v640, %v1052
    %v1181 = vadd.f32 %v642, %v1053
    %v1182 = vadd.f32 %v644, %v1054
    %v1183 = vadd.f32 %v646, %v1055
    %v1184 = vadd.f32 %v650, %v1056
    %v1185 = vadd.f32 %v652, %v1057
    %v1186 = vadd.f32 %v654, %v1058
    %v1187 = vadd.f32 %v656, %v1059
    %v1188 = vadd.f32 %v660, %v1060
    %v1189 = vadd.f32 %v662, %v1061
    %v1190 = vadd.f32 %v664, %v1062
    %v1191 = vadd.f32 %v666, %v1063
    %v1192 = vadd.f32 %v670, %v1064
    %v1193 = vadd.f32 %v672, %v1065
    %v1194 = vadd.f32 %v674, %v1066
    %v1195 = vadd.f32 %v676, %v1067
    %v1196 = vadd.f32 %v680, %v1068
    %v1197 = vadd.f32 %v682, %v1069
    %v1198 = vadd.f32 %v684, %v1070
    %v1199 = vadd.f32 %v686, %v1071
    %v1200 = vmul.f32 %v1072, 0.7978846
    %v1201 = vmul.f32 %v1073, 0.7978846
    %v1202 = vmul.f32 %v1074, 0.7978846
    %v1203 = vmul.f32 %v1075, 0.7978846
    %v1204 = vmul.f32 %v1076, 0.7978846
    %v1205 = vmul.f32 %v1077, 0.7978846
    %v1206 = vmul.f32 %v1078, 0.7978846
    %v1207 = vmul.f32 %v1079, 0.7978846
    %v1208 = vmul.f32 %v1080, 0.7978846
    %v1209 = vmul.f32 %v1081, 0.7978846
    %v1210 = vmul.f32 %v1082, 0.7978846
    %v1211 = vmul.f32 %v1083, 0.7978846
    %v1212 = vmul.f32 %v1084, 0.7978846
    %v1213 = vmul.f32 %v1085, 0.7978846
    %v1214 = vmul.f32 %v1086, 0.7978846
    %v1215 = vmul.f32 %v1087, 0.7978846
    %v1216 = vmul.f32 %v1088, 0.7978846
    %v1217 = vmul.f32 %v1089, 0.7978846
    %v1218 = vmul.f32 %v1090, 0.7978846
    %v1219 = vmul.f32 %v1091, 0.7978846
    %v1220 = vmul.f32 %v1092, 0.7978846
    %v1221 = vmul.f32 %v1093, 0.7978846
    %v1222 = vmul.f32 %v1094, 0.7978846
    %v1223 = vmul.f32 %v1095, 0.7978846
    %v1224 = vmul.f32 %v1096, 0.7978846
    %v1225 = vmul.f32 %v1097, 0.7978846
    %v1226 = vmul.f32 %v1098, 0.7978846
    %v1227 = vmul.f32 %v1099, 0.7978846
    %v1228 = vmul.f32 %v1100, 0.7978846
    %v1229 = vmul.f32 %v1101, 0.7978846
    %v1230 = vmul.f32 %v1102, 0.7978846
    %v1231 = vmul.f32 %v1103, 0.7978846
    %v1232 = vmul.f32 %v1104, 0.7978846
    %v1233 = vmul.f32 %v1105, 0.7978846
    %v1234 = vmul.f32 %v1106, 0.7978846
    %v1235 = vmul.f32 %v1107, 0.7978846
    %v1236 = vmul.f32 %v1108, 0.7978846
    %v1237 = vmul.f32 %v1109, 0.7978846
    %v1238 = vmul.f32 %v1110, 0.7978846
    %v1239 = vmul.f32 %v1111, 0.7978846
    %v1240 = vmul.f32 %v1112, 0.7978846
    %v1241 = vmul.f32 %v1113, 0.7978846
    %v1242 = vmul.f32 %v1114, 0.7978846
    %v1243 = vmul.f32 %v1115, 0.7978846
    %v1244 = vmul.f32 %v1116, 0.7978846
    %v1245 = vmul.f32 %v1117, 0.7978846
    %v1246 = vmul.f32 %v1118, 0.7978846
    %v1247 = vmul.f32 %v1119, 0.7978846
    %v1248 = vmul.f32 %v1120, 0.7978846
    %v1249 = vmul.f32 %v1121, 0.7978846
    %v1250 = vmul.f32 %v1122, 0.7978846
    %v1251 = vmul.f32 %v1123, 0.7978846
    %v1252 = vmul.f32 %v1124, 0.7978846
    %v1253 = vmul.f32 %v1125, 0.7978846
    %v1254 = vmul.f32 %v1126, 0.7978846
    %v1255 = vmul.f32 %v1127, 0.7978846
    %v1256 = vmul.f32 %v1128, 0.7978846
    %v1257 = vmul.f32 %v1129, 0.7978846
    %v1258 = vmul.f32 %v1130, 0.7978846
    %v1259 = vmul.f32 %v1131, 0.7978846
    %v1260 = vmul.f32 %v1132, 0.7978846
    %v1261 = vmul.f32 %v1133, 0.7978846
    %v1262 = vmul.f32 %v1134, 0.7978846
    %v1263 = vmul.f32 %v1135, 0.7978846
    %v1264 = vmul.f32 %v1136, 0.7978846
    %v1265 = vmul.f32 %v1137, 0.7978846
    %v1266 = vmul.f32 %v1138, 0.7978846
    %v1267 = vmul.f32 %v1139, 0.7978846
    %v1268 = vmul.f32 %v1140, 0.7978846
    %v1269 = vmul.f32 %v1141, 0.7978846
    %v1270 = vmul.f32 %v1142, 0.7978846
    %v1271 = vmul.f32 %v1143, 0.7978846
    %v1272 = vmul.f32 %v1144, 0.7978846
    %v1273 = vmul.f32 %v1145, 0.7978846
    %v1274 = vmul.f32 %v1146, 0.7978846
    %v1275 = vmul.f32 %v1147, 0.7978846
    %v1276 = vmul.f32 %v1148, 0.7978846
    %v1277 = vmul.f32 %v1149, 0.7978846
    %v1278 = vmul.f32 %v1150, 0.7978846
    %v1279 = vmul.f32 %v1151, 0.7978846
    %v1280 = vmul.f32 %v1152, 0.7978846
    %v1281 = vmul.f32 %v1153, 0.7978846
    %v1282 = vmul.f32 %v1154, 0.7978846
    %v1283 = vmul.f32 %v1155, 0.7978846
    %v1284 = vmul.f32 %v1156, 0.7978846
    %v1285 = vmul.f32 %v1157, 0.7978846
    %v1286 = vmul.f32 %v1158, 0.7978846
    %v1287 = vmul.f32 %v1159, 0.7978846
    %v1288 = vmul.f32 %v1160, 0.7978846
    %v1289 = vmul.f32 %v1161, 0.7978846
    %v1290 = vmul.f32 %v1162, 0.7978846
    %v1291 = vmul.f32 %v1163, 0.7978846
    %v1292 = vmul.f32 %v1164, 0.7978846
    %v1293 = vmul.f32 %v1165, 0.7978846
    %v1294 = vmul.f32 %v1166, 0.7978846
    %v1295 = vmul.f32 %v1167, 0.7978846
    %v1296 = vmul.f32 %v1168, 0.7978846
    %v1297 = vmul.f32 %v1169, 0.7978846
    %v1298 = vmul.f32 %v1170, 0.7978846
    %v1299 = vmul.f32 %v1171, 0.7978846
    %v1300 = vmul.f32 %v1172, 0.7978846
    %v1301 = vmul.f32 %v1173, 0.7978846
    %v1302 = vmul.f32 %v1174, 0.7978846
    %v1303 = vmul.f32 %v1175, 0.7978846
    %v1304 = vmul.f32 %v1176, 0.7978846
    %v1305 = vmul.f32 %v1177, 0.7978846
    %v1306 = vmul.f32 %v1178, 0.7978846
    %v1307 = vmul.f32 %v1179, 0.7978846
    %v1308 = vmul.f32 %v1180, 0.7978846
    %v1309 = vmul.f32 %v1181, 0.7978846
    %v1310 = vmul.f32 %v1182, 0.7978846
    %v1311 = vmul.f32 %v1183, 0.7978846
    %v1312 = vmul.f32 %v1184, 0.7978846
    %v1313 = vmul.f32 %v1185, 0.7978846
    %v1314 = vmul.f32 %v1186, 0.7978846
    %v1315 = vmul.f32 %v1187, 0.7978846
    %v1316 = vmul.f32 %v1188, 0.7978846
    %v1317 = vmul.f32 %v1189, 0.7978846
    %v1318 = vmul.f32 %v1190, 0.7978846
    %v1319 = vmul.f32 %v1191, 0.7978846
    %v1320 = vmul.f32 %v1192, 0.7978846
    %v1321 = vmul.f32 %v1193, 0.7978846
    %v1322 = vmul.f32 %v1194, 0.7978846
    %v1323 = vmul.f32 %v1195, 0.7978846
    %v1324 = vmul.f32 %v1196, 0.7978846
    %v1325 = vmul.f32 %v1197, 0.7978846
    %v1326 = vmul.f32 %v1198, 0.7978846
    %v1327 = vmul.f32 %v1199, 0.7978846
    %v1328 = vtanh.pop %v1200
    %v1329 = vtanh.pop %v1201
    %v1330 = vtanh.pop %v1202
    %v1331 = vtanh.pop %v1203
    %v1332 = vtanh.pop %v1204
    %v1333 = vtanh.pop %v1205
    %v1334 = vtanh.pop %v1206
    %v1335 = vtanh.pop %v1207
    %v1336 = vtanh.pop %v1208
    %v1337 = vtanh.pop %v1209
    %v1338 = vtanh.pop %v1210
    %v1339 = vtanh.pop %v1211
    %v1340 = vtanh.pop %v1212
    %v1341 = vtanh.pop %v1213
    %v1342 = vtanh.pop %v1214
    %v1343 = vtanh.pop %v1215
    %v1344 = vtanh.pop %v1216
    %v1345 = vtanh.pop %v1217
    %v1346 = vtanh.pop %v1218
    %v1347 = vtanh.pop %v1219
    %v1348 = vtanh.pop %v1220
    %v1349 = vtanh.pop %v1221
    %v1350 = vtanh.pop %v1222
    %v1351 = vtanh.pop %v1223
    %v1352 = vtanh.pop %v1224
    %v1353 = vtanh.pop %v1225
    %v1354 = vtanh.pop %v1226
    %v1355 = vtanh.pop %v1227
    %v1356 = vtanh.pop %v1228
    %v1357 = vtanh.pop %v1229
    %v1358 = vtanh.pop %v1230
    %v1359 = vtanh.pop %v1231
    %v1360 = vtanh.pop %v1232
    %v1361 = vtanh.pop %v1233
    %v1362 = vtanh.pop %v1234
    %v1363 = vtanh.pop %v1235
    %v1364 = vtanh.pop %v1236
    %v1365 = vtanh.pop %v1237
    %v1366 = vtanh.pop %v1238
    %v1367 = vtanh.pop %v1239
    %v1368 = vtanh.pop %v1240
    %v1369 = vtanh.pop %v1241
    %v1370 = vtanh.pop %v1242
    %v1371 = vtanh.pop %v1243
    %v1372 = vtanh.pop %v1244
    %v1373 = vtanh.pop %v1245
    %v1374 = vtanh.pop %v1246
    %v1375 = vtanh.pop %v1247
    %v1376 = vtanh.pop %v1248
    %v1377 = vtanh.pop %v1249
    %v1378 = vtanh.pop %v1250
    %v1379 = vtanh.pop %v1251
    %v1380 = vtanh.pop %v1252
    %v1381 = vtanh.pop %v1253
    %v1382 = vtanh.pop %v1254
    %v1383 = vtanh.pop %v1255
    %v1384 = vtanh.pop %v1256
    %v1385 = vtanh.pop %v1257
    %v1386 = vtanh.pop %v1258
    %v1387 = vtanh.pop %v1259
    %v1388 = vtanh.pop %v1260
    %v1389 = vtanh.pop %v1261
    %v1390 = vtanh.pop %v1262
    %v1391 = vtanh.pop %v1263
    %v1392 = vtanh.pop %v1264
    %v1393 = vtanh.pop %v1265
    %v1394 = vtanh.pop %v1266
    %v1395 = vtanh.pop %v1267
    %v1396 = vtanh.pop %v1268
    %v1397 = vtanh.pop %v1269
    %v1398 = vtanh.pop %v1270
    %v1399 = vtanh.pop %v1271
    %v1400 = vtanh.pop %v1272
    %v1401 = vtanh.pop %v1273
    %v1402 = vtanh.pop %v1274
    %v1403 = vtanh.pop %v1275
    %v1404 = vtanh.pop %v1276
    %v1405 = vtanh.pop %v1277
    %v1406 = vtanh.pop %v1278
    %v1407 = vtanh.pop %v1279
    %v1408 = vtanh.pop %v1280
    %v1409 = vtanh.pop %v1281
    %v1410 = vtanh.pop %v1282
    %v1411 = vtanh.pop %v1283
    %v1412 = vtanh.pop %v1284
    %v1413 = vtanh.pop %v1285
    %v1414 = vtanh.pop %v1286
    %v1415 = vtanh.pop %v1287
    %v1416 = vtanh.pop %v1288
    %v1417 = vtanh.pop %v1289
    %v1418 = vtanh.pop %v1290
    %v1419 = vtanh.pop %v1291
    %v1420 = vtanh.pop %v1292
    %v1421 = vtanh.pop %v1293
    %v1422 = vtanh.pop %v1294
    %v1423 = vtanh.pop %v1295
    %v1424 = vtanh.pop %v1296
    %v1425 = vtanh.pop %v1297
    %v1426 = vtanh.pop %v1298
    %v1427 = vtanh.pop %v1299
    %v1428 = vtanh.pop %v1300
    %v1429 = vtanh.pop %v1301
    %v1430 = vtanh.pop %v1302
    %v1431 = vtanh.pop %v1303
    %v1432 = vtanh.pop %v1304
    %v1433 = vtanh.pop %v1305
    %v1434 = vtanh.pop %v1306
    %v1435 = vtanh.pop %v1307
    %v1436 = vtanh.pop %v1308
    %v1437 = vtanh.pop %v1309
    %v1438 = vtanh.pop %v1310
    %v1439 = vtanh.pop %v1311
    %v1440 = vtanh.pop %v1312
    %v1441 = vtanh.pop %v1313
    %v1442 = vtanh.pop %v1314
    %v1443 = vtanh.pop %v1315
    %v1444 = vtanh.pop %v1316
    %v1445 = vtanh.pop %v1317
    %v1446 = vtanh.pop %v1318
    %v1447 = vtanh.pop %v1319
    %v1448 = vtanh.pop %v1320
    %v1449 = vtanh.pop %v1321
    %v1450 = vtanh.pop %v1322
    %v1451 = vtanh.pop %v1323
    %v1452 = vtanh.pop %v1324
    %v1453 = vtanh.pop %v1325
    %v1454 = vtanh.pop %v1326
    %v1455 = vtanh.pop %v1327
    %v1456 = vadd.f32 %v1328, 1.0
    %v1457 = vadd.f32 %v1329, 1.0
    %v1458 = vadd.f32 %v1330, 1.0
    %v1459 = vadd.f32 %v1331, 1.0
    %v1460 = vadd.f32 %v1332, 1.0
    %v1461 = vadd.f32 %v1333, 1.0
    %v1462 = vadd.f32 %v1334, 1.0
    %v1463 = vadd.f32 %v1335, 1.0
    %v1464 = vadd.f32 %v1336, 1.0
    %v1465 = vadd.f32 %v1337, 1.0
    %v1466 = vadd.f32 %v1338, 1.0
    %v1467 = vadd.f32 %v1339, 1.0
    %v1468 = vadd.f32 %v1340, 1.0
    %v1469 = vadd.f32 %v1341, 1.0
    %v1470 = vadd.f32 %v1342, 1.0
    %v1471 = vadd.f32 %v1343, 1.0
    %v1472 = vadd.f32 %v1344, 1.0
    %v1473 = vadd.f32 %v1345, 1.0
    %v1474 = vadd.f32 %v1346, 1.0
    %v1475 = vadd.f32 %v1347, 1.0
    %v1476 = vadd.f32 %v1348, 1.0
    %v1477 = vadd.f32 %v1349, 1.0
    %v1478 = vadd.f32 %v1350, 1.0
    %v1479 = vadd.f32 %v1351, 1.0
    %v1480 = vadd.f32 %v1352, 1.0
    %v1481 = vadd.f32 %v1353, 1.0
    %v1482 = vadd.f32 %v1354, 1.0
    %v1483 = vadd.f32 %v1355, 1.0
    %v1484 = vadd.f32 %v1356, 1.0
    %v1485 = vadd.f32 %v1357, 1.0
    %v1486 = vadd.f32 %v1358, 1.0
    %v1487 = vadd.f32 %v1359, 1.0
    %v1488 = vadd.f32 %v1360, 1.0
    %v1489 = vadd.f32 %v1361, 1.0
    %v1490 = vadd.f32 %v1362, 1.0
    %v1491 = vadd.f32 %v1363, 1.0
    %v1492 = vadd.f32 %v1364, 1.0
    %v1493 = vadd.f32 %v1365, 1.0
    %v1494 = vadd.f32 %v1366, 1.0
    %v1495 = vadd.f32 %v1367, 1.0
    %v1496 = vadd.f32 %v1368, 1.0
    %v1497 = vadd.f32 %v1369, 1.0
    %v1498 = vadd.f32 %v1370, 1.0
    %v1499 = vadd.f32 %v1371, 1.0
    %v1500 = vadd.f32 %v1372, 1.0
    %v1501 = vadd.f32 %v1373, 1.0
    %v1502 = vadd.f32 %v1374, 1.0
    %v1503 = vadd.f32 %v1375, 1.0
    %v1504 = vadd.f32 %v1376, 1.0
    %v1505 = vadd.f32 %v1377, 1.0
    %v1506 = vadd.f32 %v1378, 1.0
    %v1507 = vadd.f32 %v1379, 1.0
    %v1508 = vadd.f32 %v1380, 1.0
    %v1509 = vadd.f32 %v1381, 1.0
    %v1510 = vadd.f32 %v1382, 1.0
    %v1511 = vadd.f32 %v1383, 1.0
    %v1512 = vadd.f32 %v1384, 1.0
    %v1513 = vadd.f32 %v1385, 1.0
    %v1514 = vadd.f32 %v1386, 1.0
    %v1515 = vadd.f32 %v1387, 1.0
    %v1516 = vadd.f32 %v1388, 1.0
    %v1517 = vadd.f32 %v1389, 1.0
    %v1518 = vadd.f32 %v1390, 1.0
    %v1519 = vadd.f32 %v1391, 1.0
    %v1520 = vadd.f32 %v1392, 1.0
    %v1521 = vadd.f32 %v1393, 1.0
    %v1522 = vadd.f32 %v1394, 1.0
    %v1523 = vadd.f32 %v1395, 1.0
    %v1524 = vadd.f32 %v1396, 1.0
    %v1525 = vadd.f32 %v1397, 1.0
    %v1526 = vadd.f32 %v1398, 1.0
    %v1527 = vadd.f32 %v1399, 1.0
    %v1528 = vadd.f32 %v1400, 1.0
    %v1529 = vadd.f32 %v1401, 1.0
    %v1530 = vadd.f32 %v1402, 1.0
    %v1531 = vadd.f32 %v1403, 1.0
    %v1532 = vadd.f32 %v1404, 1.0
    %v1533 = vadd.f32 %v1405, 1.0
    %v1534 = vadd.f32 %v1406, 1.0
    %v1535 = vadd.f32 %v1407, 1.0
    %v1536 = vadd.f32 %v1408, 1.0
    %v1537 = vadd.f32 %v1409, 1.0
    %v1538 = vadd.f32 %v1410, 1.0
    %v1539 = vadd.f32 %v1411, 1.0
    %v1540 = vadd.f32 %v1412, 1.0
    %v1541 = vadd.f32 %v1413, 1.0
    %v1542 = vadd.f32 %v1414, 1.0
    %v1543 = vadd.f32 %v1415, 1.0
    %v1544 = vadd.f32 %v1416, 1.0
    %v1545 = vadd.f32 %v1417, 1.0
    %v1546 = vadd.f32 %v1418, 1.0
    %v1547 = vadd.f32 %v1419, 1.0
    %v1548 = vadd.f32 %v1420, 1.0
    %v1549 = vadd.f32 %v1421, 1.0
    %v1550 = vadd.f32 %v1422, 1.0
    %v1551 = vadd.f32 %v1423, 1.0
    %v1552 = vadd.f32 %v1424, 1.0
    %v1553 = vadd.f32 %v1425, 1.0
    %v1554 = vadd.f32 %v1426, 1.0
    %v1555 = vadd.f32 %v1427, 1.0
    %v1556 = vadd.f32 %v1428, 1.0
    %v1557 = vadd.f32 %v1429, 1.0
    %v1558 = vadd.f32 %v1430, 1.0
    %v1559 = vadd.f32 %v1431, 1.0
    %v1560 = vadd.f32 %v1432, 1.0
    %v1561 = vadd.f32 %v1433, 1.0
    %v1562 = vadd.f32 %v1434, 1.0
    %v1563 = vadd.f32 %v1435, 1.0
    %v1564 = vadd.f32 %v1436, 1.0
    %v1565 = vadd.f32 %v1437, 1.0
    %v1566 = vadd.f32 %v1438, 1.0
    %v1567 = vadd.f32 %v1439, 1.0
    %v1568 = vadd.f32 %v1440, 1.0
    %v1569 = vadd.f32 %v1441, 1.0
    %v1570 = vadd.f32 %v1442, 1.0
    %v1571 = vadd.f32 %v1443, 1.0
    %v1572 = vadd.f32 %v1444, 1.0
    %v1573 = vadd.f32 %v1445, 1.0
    %v1574 = vadd.f32 %v1446, 1.0
    %v1575 = vadd.f32 %v1447, 1.0
    %v1576 = vadd.f32 %v1448, 1.0
    %v1577 = vadd.f32 %v1449, 1.0
    %v1578 = vadd.f32 %v1450, 1.0
    %v1579 = vadd.f32 %v1451, 1.0
    %v1580 = vadd.f32 %v1452, 1.0
    %v1581 = vadd.f32 %v1453, 1.0
    %v1582 = vadd.f32 %v1454, 1.0
    %v1583 = vadd.f32 %v1455, 1.0
    %v1584 = vmul.f32 %v1456, 0.5
    %v1585 = vmul.f32 %v1457, 0.5
    %v1586 = vmul.f32 %v1458, 0.5
    %v1587 = vmul.f32 %v1459, 0.5
    %v1588 = vmul.f32 %v1460, 0.5
    %v1589 = vmul.f32 %v1461, 0.5
    %v1590 = vmul.f32 %v1462, 0.5
    %v1591 = vmul.f32 %v1463, 0.5
    %v1592 = vmul.f32 %v1464, 0.5
    %v1593 = vmul.f32 %v1465, 0.5
    %v1594 = vmul.f32 %v1466, 0.5
    %v1595 = vmul.f32 %v1467, 0.5
    %v1596 = vmul.f32 %v1468, 0.5
    %v1597 = vmul.f32 %v1469, 0.5
    %v1598 = vmul.f32 %v1470, 0.5
    %v1599 = vmul.f32 %v1471, 0.5
    %v1600 = vmul.f32 %v1472, 0.5
    %v1601 = vmul.f32 %v1473, 0.5
    %v1602 = vmul.f32 %v1474, 0.5
    %v1603 = vmul.f32 %v1475, 0.5
    %v1604 = vmul.f32 %v1476, 0.5
    %v1605 = vmul.f32 %v1477, 0.5
    %v1606 = vmul.f32 %v1478, 0.5
    %v1607 = vmul.f32 %v1479, 0.5
    %v1608 = vmul.f32 %v1480, 0.5
    %v1609 = vmul.f32 %v1481, 0.5
    %v1610 = vmul.f32 %v1482, 0.5
    %v1611 = vmul.f32 %v1483, 0.5
    %v1612 = vmul.f32 %v1484, 0.5
    %v1613 = vmul.f32 %v1485, 0.5
    %v1614 = vmul.f32 %v1486, 0.5
    %v1615 = vmul.f32 %v1487, 0.5
    %v1616 = vmul.f32 %v1488, 0.5
    %v1617 = vmul.f32 %v1489, 0.5
    %v1618 = vmul.f32 %v1490, 0.5
    %v1619 = vmul.f32 %v1491, 0.5
    %v1620 = vmul.f32 %v1492, 0.5
    %v1621 = vmul.f32 %v1493, 0.5
    %v1622 = vmul.f32 %v1494, 0.5
    %v1623 = vmul.f32 %v1495, 0.5
    %v1624 = vmul.f32 %v1496, 0.5
    %v1625 = vmul.f32 %v1497, 0.5
    %v1626 = vmul.f32 %v1498, 0.5
    %v1627 = vmul.f32 %v1499, 0.5
    %v1628 = vmul.f32 %v1500, 0.5
    %v1629 = vmul.f32 %v1501, 0.5
    %v1630 = vmul.f32 %v1502, 0.5
    %v1631 = vmul.f32 %v1503, 0.5
    %v1632 = vmul.f32 %v1504, 0.5
    %v1633 = vmul.f32 %v1505, 0.5
    %v1634 = vmul.f32 %v1506, 0.5
    %v1635 = vmul.f32 %v1507, 0.5
    %v1636 = vmul.f32 %v1508, 0.5
    %v1637 = vmul.f32 %v1509, 0.5
    %v1638 = vmul.f32 %v1510, 0.5
    %v1639 = vmul.f32 %v1511, 0.5
    %v1640 = vmul.f32 %v1512, 0.5
    %v1641 = vmul.f32 %v1513, 0.5
    %v1642 = vmul.f32 %v1514, 0.5
    %v1643 = vmul.f32 %v1515, 0.5
    %v1644 = vmul.f32 %v1516, 0.5
    %v1645 = vmul.f32 %v1517, 0.5
    %v1646 = vmul.f32 %v1518, 0.5
    %v1647 = vmul.f32 %v1519, 0.5
    %v1648 = vmul.f32 %v1520, 0.5
    %v1649 = vmul.f32 %v1521, 0.5
    %v1650 = vmul.f32 %v1522, 0.5
    %v1651 = vmul.f32 %v1523, 0.5
    %v1652 = vmul.f32 %v1524, 0.5
    %v1653 = vmul.f32 %v1525, 0.5
    %v1654 = vmul.f32 %v1526, 0.5
    %v1655 = vmul.f32 %v1527, 0.5
    %v1656 = vmul.f32 %v1528, 0.5
    %v1657 = vmul.f32 %v1529, 0.5
    %v1658 = vmul.f32 %v1530, 0.5
    %v1659 = vmul.f32 %v1531, 0.5
    %v1660 = vmul.f32 %v1532, 0.5
    %v1661 = vmul.f32 %v1533, 0.5
    %v1662 = vmul.f32 %v1534, 0.5
    %v1663 = vmul.f32 %v1535, 0.5
    %v1664 = vmul.f32 %v1536, 0.5
    %v1665 = vmul.f32 %v1537, 0.5
    %v1666 = vmul.f32 %v1538, 0.5
    %v1667 = vmul.f32 %v1539, 0.5
    %v1668 = vmul.f32 %v1540, 0.5
    %v1669 = vmul.f32 %v1541, 0.5
    %v1670 = vmul.f32 %v1542, 0.5
    %v1671 = vmul.f32 %v1543, 0.5
    %v1672 = vmul.f32 %v1544, 0.5
    %v1673 = vmul.f32 %v1545, 0.5
    %v1674 = vmul.f32 %v1546, 0.5
    %v1675 = vmul.f32 %v1547, 0.5
    %v1676 = vmul.f32 %v1548, 0.5
    %v1677 = vmul.f32 %v1549, 0.5
    %v1678 = vmul.f32 %v1550, 0.5
    %v1679 = vmul.f32 %v1551, 0.5
    %v1680 = vmul.f32 %v1552, 0.5
    %v1681 = vmul.f32 %v1553, 0.5
    %v1682 = vmul.f32 %v1554, 0.5
    %v1683 = vmul.f32 %v1555, 0.5
    %v1684 = vmul.f32 %v1556, 0.5
    %v1685 = vmul.f32 %v1557, 0.5
    %v1686 = vmul.f32 %v1558, 0.5
    %v1687 = vmul.f32 %v1559, 0.5
    %v1688 = vmul.f32 %v1560, 0.5
    %v1689 = vmul.f32 %v1561, 0.5
    %v1690 = vmul.f32 %v1562, 0.5
    %v1691 = vmul.f32 %v1563, 0.5
    %v1692 = vmul.f32 %v1564, 0.5
    %v1693 = vmul.f32 %v1565, 0.5
    %v1694 = vmul.f32 %v1566, 0.5
    %v1695 = vmul.f32 %v1567, 0.5
    %v1696 = vmul.f32 %v1568, 0.5
    %v1697 = vmul.f32 %v1569, 0.5
    %v1698 = vmul.f32 %v1570, 0.5
    %v1699 = vmul.f32 %v1571, 0.5
    %v1700 = vmul.f32 %v1572, 0.5
    %v1701 = vmul.f32 %v1573, 0.5
    %v1702 = vmul.f32 %v1574, 0.5
    %v1703 = vmul.f32 %v1575, 0.5
    %v1704 = vmul.f32 %v1576, 0.5
    %v1705 = vmul.f32 %v1577, 0.5
    %v1706 = vmul.f32 %v1578, 0.5
    %v1707 = vmul.f32 %v1579, 0.5
    %v1708 = vmul.f32 %v1580, 0.5
    %v1709 = vmul.f32 %v1581, 0.5
    %v1710 = vmul.f32 %v1582, 0.5
    %v1711 = vmul.f32 %v1583, 0.5
    %v1712 = vmul.f32 %v370, %v1584
    %v1713 = vmul.f32 %v372, %v1585
    %v1714 = vmul.f32 %v374, %v1586
    %v1715 = vmul.f32 %v376, %v1587
    %v1716 = vmul.f32 %v380, %v1588
    %v1717 = vmul.f32 %v382, %v1589
    %v1718 = vmul.f32 %v384, %v1590
    %v1719 = vmul.f32 %v386, %v1591
    %v1720 = vmul.f32 %v390, %v1592
    %v1721 = vmul.f32 %v392, %v1593
    %v1722 = vmul.f32 %v394, %v1594
    %v1723 = vmul.f32 %v396, %v1595
    %v1724 = vmul.f32 %v400, %v1596
    %v1725 = vmul.f32 %v402, %v1597
    %v1726 = vmul.f32 %v404, %v1598
    %v1727 = vmul.f32 %v406, %v1599
    %v1728 = vmul.f32 %v410, %v1600
    %v1729 = vmul.f32 %v412, %v1601
    %v1730 = vmul.f32 %v414, %v1602
    %v1731 = vmul.f32 %v416, %v1603
    %v1732 = vmul.f32 %v420, %v1604
    %v1733 = vmul.f32 %v422, %v1605
    %v1734 = vmul.f32 %v424, %v1606
    %v1735 = vmul.f32 %v426, %v1607
    %v1736 = vmul.f32 %v430, %v1608
    %v1737 = vmul.f32 %v432, %v1609
    %v1738 = vmul.f32 %v434, %v1610
    %v1739 = vmul.f32 %v436, %v1611
    %v1740 = vmul.f32 %v440, %v1612
    %v1741 = vmul.f32 %v442, %v1613
    %v1742 = vmul.f32 %v444, %v1614
    %v1743 = vmul.f32 %v446, %v1615
    %v1744 = vmul.f32 %v450, %v1616
    %v1745 = vmul.f32 %v452, %v1617
    %v1746 = vmul.f32 %v454, %v1618
    %v1747 = vmul.f32 %v456, %v1619
    %v1748 = vmul.f32 %v460, %v1620
    %v1749 = vmul.f32 %v462, %v1621
    %v1750 = vmul.f32 %v464, %v1622
    %v1751 = vmul.f32 %v466, %v1623
    %v1752 = vmul.f32 %v470, %v1624
    %v1753 = vmul.f32 %v472, %v1625
    %v1754 = vmul.f32 %v474, %v1626
    %v1755 = vmul.f32 %v476, %v1627
    %v1756 = vmul.f32 %v480, %v1628
    %v1757 = vmul.f32 %v482, %v1629
    %v1758 = vmul.f32 %v484, %v1630
    %v1759 = vmul.f32 %v486, %v1631
    %v1760 = vmul.f32 %v490, %v1632
    %v1761 = vmul.f32 %v492, %v1633
    %v1762 = vmul.f32 %v494, %v1634
    %v1763 = vmul.f32 %v496, %v1635
    %v1764 = vmul.f32 %v500, %v1636
    %v1765 = vmul.f32 %v502, %v1637
    %v1766 = vmul.f32 %v504, %v1638
    %v1767 = vmul.f32 %v506, %v1639
    %v1768 = vmul.f32 %v510, %v1640
    %v1769 = vmul.f32 %v512, %v1641
    %v1770 = vmul.f32 %v514, %v1642
    %v1771 = vmul.f32 %v516, %v1643
    %v1772 = vmul.f32 %v520, %v1644
    %v1773 = vmul.f32 %v522, %v1645
    %v1774 = vmul.f32 %v524, %v1646
    %v1775 = vmul.f32 %v526, %v1647
    %v1776 = vmul.f32 %v530, %v1648
    %v1777 = vmul.f32 %v532, %v1649
    %v1778 = vmul.f32 %v534, %v1650
    %v1779 = vmul.f32 %v536, %v1651
    %v1780 = vmul.f32 %v540, %v1652
    %v1781 = vmul.f32 %v542, %v1653
    %v1782 = vmul.f32 %v544, %v1654
    %v1783 = vmul.f32 %v546, %v1655
    %v1784 = vmul.f32 %v550, %v1656
    %v1785 = vmul.f32 %v552, %v1657
    %v1786 = vmul.f32 %v554, %v1658
    %v1787 = vmul.f32 %v556, %v1659
    %v1788 = vmul.f32 %v560, %v1660
    %v1789 = vmul.f32 %v562, %v1661
    %v1790 = vmul.f32 %v564, %v1662
    %v1791 = vmul.f32 %v566, %v1663
    %v1792 = vmul.f32 %v570, %v1664
    %v1793 = vmul.f32 %v572, %v1665
    %v1794 = vmul.f32 %v574, %v1666
    %v1795 = vmul.f32 %v576, %v1667
    %v1796 = vmul.f32 %v580, %v1668
    %v1797 = vmul.f32 %v582, %v1669
    %v1798 = vmul.f32 %v584, %v1670
    %v1799 = vmul.f32 %v586, %v1671
    %v1800 = vmul.f32 %v590, %v1672
    %v1801 = vmul.f32 %v592, %v1673
    %v1802 = vmul.f32 %v594, %v1674
    %v1803 = vmul.f32 %v596, %v1675
    %v1804 = vmul.f32 %v600, %v1676
    %v1805 = vmul.f32 %v602, %v1677
    %v1806 = vmul.f32 %v604, %v1678
    %v1807 = vmul.f32 %v606, %v1679
    %v1808 = vmul.f32 %v610, %v1680
    %v1809 = vmul.f32 %v612, %v1681
    %v1810 = vmul.f32 %v614, %v1682
    %v1811 = vmul.f32 %v616, %v1683
    %v1812 = vmul.f32 %v620, %v1684
    %v1813 = vmul.f32 %v622, %v1685
    %v1814 = vmul.f32 %v624, %v1686
    %v1815 = vmul.f32 %v626, %v1687
    %v1816 = vmul.f32 %v630, %v1688
    %v1817 = vmul.f32 %v632, %v1689
    %v1818 = vmul.f32 %v634, %v1690
    %v1819 = vmul.f32 %v636, %v1691
    %v1820 = vmul.f32 %v640, %v1692
    %v1821 = vmul.f32 %v642, %v1693
    %v1822 = vmul.f32 %v644, %v1694
    %v1823 = vmul.f32 %v646, %v1695
    %v1824 = vmul.f32 %v650, %v1696
    %v1825 = vmul.f32 %v652, %v1697
    %v1826 = vmul.f32 %v654, %v1698
    %v1827 = vmul.f32 %v656, %v1699
    %v1828 = vmul.f32 %v660, %v1700
    %v1829 = vmul.f32 %v662, %v1701
    %v1830 = vmul.f32 %v664, %v1702
    %v1831 = vmul.f32 %v666, %v1703
    %v1832 = vmul.f32 %v670, %v1704
    %v1833 = vmul.f32 %v672, %v1705
    %v1834 = vmul.f32 %v674, %v1706
    %v1835 = vmul.f32 %v676, %v1707
    %v1836 = vmul.f32 %v680, %v1708
    %v1837 = vmul.f32 %v682, %v1709
    %v1838 = vmul.f32 %v684, %v1710
    %v1839 = vmul.f32 %v686, %v1711
    %v1840 = vpack.c.bf16 %v1714, %v1712
    %v1841 = vpack.c.bf16 %v1715, %v1713
    %v1842 = vpack.c.bf16 %v1718, %v1716
    %v1843 = vpack.c.bf16 %v1719, %v1717
    %v1844 = vpack.c.bf16 %v1722, %v1720
    %v1845 = vpack.c.bf16 %v1723, %v1721
    %v1846 = vpack.c.bf16 %v1726, %v1724
    %v1847 = vpack.c.bf16 %v1727, %v1725
    %v1848 = vpack.c.bf16 %v1730, %v1728
    %v1849 = vpack.c.bf16 %v1731, %v1729
    %v1850 = vpack.c.bf16 %v1734, %v1732
    %v1851 = vpack.c.bf16 %v1735, %v1733
    %v1852 = vpack.c.bf16 %v1738, %v1736
    %v1853 = vpack.c.bf16 %v1739, %v1737
    %v1854 = vpack.c.bf16 %v1742, %v1740
    %v1855 = vpack.c.bf16 %v1743, %v1741
    %v1856 = vpack.c.bf16 %v1746, %v1744
    %v1857 = vpack.c.bf16 %v1747, %v1745
    %v1858 = vpack.c.bf16 %v1750, %v1748
    %v1859 = vpack.c.bf16 %v1751, %v1749
    %v1860 = vpack.c.bf16 %v1754, %v1752
    %v1861 = vpack.c.bf16 %v1755, %v1753
    %v1862 = vpack.c.bf16 %v1758, %v1756
    %v1863 = vpack.c.bf16 %v1759, %v1757
    %v1864 = vpack.c.bf16 %v1762, %v1760
    %v1865 = vpack.c.bf16 %v1763, %v1761
    %v1866 = vpack.c.bf16 %v1766, %v1764
    %v1867 = vpack.c.bf16 %v1767, %v1765
    %v1868 = vpack.c.bf16 %v1770, %v1768
    %v1869 = vpack.c.bf16 %v1771, %v1769
    %v1870 = vpack.c.bf16 %v1774, %v1772
    %v1871 = vpack.c.bf16 %v1775, %v1773
    %v1872 = vpack.c.bf16 %v1778, %v1776
    %v1873 = vpack.c.bf16 %v1779, %v1777
    %v1874 = vpack.c.bf16 %v1782, %v1780
    %v1875 = vpack.c.bf16 %v1783, %v1781
    %v1876 = vpack.c.bf16 %v1786, %v1784
    %v1877 = vpack.c.bf16 %v1787, %v1785
    %v1878 = vpack.c.bf16 %v1790, %v1788
    %v1879 = vpack.c.bf16 %v1791, %v1789
    %v1880 = vpack.c.bf16 %v1794, %v1792
    %v1881 = vpack.c.bf16 %v1795, %v1793
    %v1882 = vpack.c.bf16 %v1798, %v1796
    %v1883 = vpack.c.bf16 %v1799, %v1797
    %v1884 = vpack.c.bf16 %v1802, %v1800
    %v1885 = vpack.c.bf16 %v1803, %v1801
    %v1886 = vpack.c.bf16 %v1806, %v1804
    %v1887 = vpack.c.bf16 %v1807, %v1805
    %v1888 = vpack.c.bf16 %v1810, %v1808
    %v1889 = vpack.c.bf16 %v1811, %v1809
    %v1890 = vpack.c.bf16 %v1814, %v1812
    %v1891 = vpack.c.bf16 %v1815, %v1813
    %v1892 = vpack.c.bf16 %v1818, %v1816
    %v1893 = vpack.c.bf16 %v1819, %v1817
    %v1894 = vpack.c.bf16 %v1822, %v1820
    %v1895 = vpack.c.bf16 %v1823, %v1821
    %v1896 = vpack.c.bf16 %v1826, %v1824
    %v1897 = vpack.c.bf16 %v1827, %v1825
    %v1898 = vpack.c.bf16 %v1830, %v1828
    %v1899 = vpack.c.bf16 %v1831, %v1829
    %v1900 = vpack.c.bf16 %v1834, %v1832
    %v1901 = vpack.c.bf16 %v1835, %v1833
    %v1902 = vpack.c.bf16 %v1838, %v1836
    %v1903 = vpack.c.bf16 %v1839, %v1837
    %v1904 = vld [vmem:[#allocation2] sm:$0xff]
    %v1905 = vld [vmem:[#allocation2 + $0x8] sm:$0xff]
    %v1906 = vld [vmem:[#allocation2 + $0x10] sm:$0xff]
    %v1907 = vld [vmem:[#allocation2 + $0x18] sm:$0xff]
    %v1908 = vld [vmem:[#allocation2 + $0x20] sm:$0xff]
    %v1909 = vld [vmem:[#allocation2 + $0x28] sm:$0xff]
    %v1910 = vld [vmem:[#allocation2 + $0x30] sm:$0xff]
    %v1911 = vld [vmem:[#allocation2 + $0x38] sm:$0xff]
    %v1912 = vld [vmem:[#allocation2 + $0x40] sm:$0xff]
    %v1913 = vld [vmem:[#allocation2 + $0x48] sm:$0xff]
    %v1914 = vld [vmem:[#allocation2 + $0x50] sm:$0xff]
    %v1915 = vld [vmem:[#allocation2 + $0x58] sm:$0xff]
    %v1916 = vld [vmem:[#allocation2 + $0x60] sm:$0xff]
    %v1917 = vld [vmem:[#allocation2 + $0x68] sm:$0xff]
    %v1918 = vld [vmem:[#allocation2 + $0x70] sm:$0xff]
    %v1919 = vld [vmem:[#allocation2 + $0x78] sm:$0xff]
    %v1920 = vld [vmem:[#allocation2 + $0x80] sm:$0xff]
    %v1921 = vld [vmem:[#allocation2 + $0x88] sm:$0xff]
    %v1922 = vld [vmem:[#allocation2 + $0x90] sm:$0xff]
    %v1923 = vld [vmem:[#allocation2 + $0x98] sm:$0xff]
    %v1924 = vld [vmem:[#allocation2 + $0xa0] sm:$0xff]
    %v1925 = vld [vmem:[#allocation2 + $0xa8] sm:$0xff]
    %v1926 = vld [vmem:[#allocation2 + $0xb0] sm:$0xff]
    %v1927 = vld [vmem:[#allocation2 + $0xb8] sm:$0xff]
    %v1928 = vld [vmem:[#allocation2 + $0xc0] sm:$0xff]
    %v1929 = vld [vmem:[#allocation2 + $0xc8] sm:$0xff]
    %v1930 = vld [vmem:[#allocation2 + $0xd0] sm:$0xff]
    %v1931 = vld [vmem:[#allocation2 + $0xd8] sm:$0xff]
    %v1932 = vld [vmem:[#allocation2 + $0xe0] sm:$0xff]
    %v1933 = vld [vmem:[#allocation2 + $0xe8] sm:$0xff]
    %v1934 = vld [vmem:[#allocation2 + $0xf0] sm:$0xff]
    %v1935 = vld [vmem:[#allocation2 + $0xf8] sm:$0xff]
    %v1936 = vld [vmem:[#allocation2 + $0x100] sm:$0xff]
    %v1937 = vld [vmem:[#allocation2 + $0x108] sm:$0xff]
    %v1938 = vld [vmem:[#allocation2 + $0x110] sm:$0xff]
    %v1939 = vld [vmem:[#allocation2 + $0x118] sm:$0xff]
    %v1940 = vld [vmem:[#allocation2 + $0x120] sm:$0xff]
    %v1941 = vld [vmem:[#allocation2 + $0x128] sm:$0xff]
    %v1942 = vld [vmem:[#allocation2 + $0x130] sm:$0xff]
    %v1943 = vld [vmem:[#allocation2 + $0x138] sm:$0xff]
    %v1944 = vld [vmem:[#allocation2 + $0x140] sm:$0xff]
    %v1945 = vld [vmem:[#allocation2 + $0x148] sm:$0xff]
    %v1946 = vld [vmem:[#allocation2 + $0x150] sm:$0xff]
    %v1947 = vld [vmem:[#allocation2 + $0x158] sm:$0xff]
    %v1948 = vld [vmem:[#allocation2 + $0x160] sm:$0xff]
    %v1949 = vld [vmem:[#allocation2 + $0x168] sm:$0xff]
    %v1950 = vld [vmem:[#allocation2 + $0x170] sm:$0xff]
    %v1951 = vld [vmem:[#allocation2 + $0x178] sm:$0xff]
    %v1952 = vld [vmem:[#allocation2 + $0x180] sm:$0xff]
    %v1953 = vld [vmem:[#allocation2 + $0x188] sm:$0xff]
    %v1954 = vld [vmem:[#allocation2 + $0x190] sm:$0xff]
    %v1955 = vld [vmem:[#allocation2 + $0x198] sm:$0xff]
    %v1956 = vld [vmem:[#allocation2 + $0x1a0] sm:$0xff]
    %v1957 = vld [vmem:[#allocation2 + $0x1a8] sm:$0xff]
    %v1958 = vld [vmem:[#allocation2 + $0x1b0] sm:$0xff]
    %v1959 = vld [vmem:[#allocation2 + $0x1b8] sm:$0xff]
    %v1960 = vld [vmem:[#allocation2 + $0x1c0] sm:$0xff]
    %v1961 = vld [vmem:[#allocation2 + $0x1c8] sm:$0xff]
    %v1962 = vld [vmem:[#allocation2 + $0x1d0] sm:$0xff]
    %v1963 = vld [vmem:[#allocation2 + $0x1d8] sm:$0xff]
    %v1964 = vld [vmem:[#allocation2 + $0x1e0] sm:$0xff]
    %v1965 = vld [vmem:[#allocation2 + $0x1e8] sm:$0xff]
    %v1966 = vld [vmem:[#allocation2 + $0x1f0] sm:$0xff]
    %v1967 = vld [vmem:[#allocation2 + $0x1f8] sm:$0xff]
    %v1968 = vld [vmem:[#allocation8] sm:$0xf]
    %v1969 = vld [vmem:[#allocation8 + $0x4] sm:$0xf]
    %v1970 = vld [vmem:[#allocation8 + $0x8] sm:$0xf]
    %v1971 = vld [vmem:[#allocation8 + $0xc] sm:$0xf]
    %v1972 = vld [vmem:[#allocation8 + $0x10] sm:$0xf]
    %v1973 = vld [vmem:[#allocation8 + $0x14] sm:$0xf]
    %v1974 = vld [vmem:[#allocation8 + $0x18] sm:$0xf]
    %v1975 = vld [vmem:[#allocation8 + $0x1c] sm:$0xf]
    %v1976 = vld [vmem:[#allocation8 + $0x20] sm:$0xf]
    %v1977 = vld [vmem:[#allocation8 + $0x24] sm:$0xf]
    %v1978 = vld [vmem:[#allocation8 + $0x28] sm:$0xf]
    %v1979 = vld [vmem:[#allocation8 + $0x2c] sm:$0xf]
    %v1980 = vld [vmem:[#allocation8 + $0x30] sm:$0xf]
    %v1981 = vld [vmem:[#allocation8 + $0x34] sm:$0xf]
    %v1982 = vld [vmem:[#allocation8 + $0x38] sm:$0xf]
    %v1983 = vld [vmem:[#allocation8 + $0x3c] sm:$0xf]
    %v1984 = vld [vmem:[#allocation8 + $0x40] sm:$0xf]
    %v1985 = vld [vmem:[#allocation8 + $0x44] sm:$0xf]
    %v1986 = vld [vmem:[#allocation8 + $0x48] sm:$0xf]
    %v1987 = vld [vmem:[#allocation8 + $0x4c] sm:$0xf]
    %v1988 = vld [vmem:[#allocation8 + $0x50] sm:$0xf]
    %v1989 = vld [vmem:[#allocation8 + $0x54] sm:$0xf]
    %v1990 = vld [vmem:[#allocation8 + $0x58] sm:$0xf]
    %v1991 = vld [vmem:[#allocation8 + $0x5c] sm:$0xf]
    %v1992 = vld [vmem:[#allocation8 + $0x60] sm:$0xf]
    %v1993 = vld [vmem:[#allocation8 + $0x64] sm:$0xf]
    %v1994 = vld [vmem:[#allocation8 + $0x68] sm:$0xf]
    %v1995 = vld [vmem:[#allocation8 + $0x6c] sm:$0xf]
    %v1996 = vld [vmem:[#allocation8 + $0x70] sm:$0xf]
    %v1997 = vld [vmem:[#allocation8 + $0x74] sm:$0xf]
    %v1998 = vld [vmem:[#allocation8 + $0x78] sm:$0xf]
    %v1999 = vld [vmem:[#allocation8 + $0x7c] sm:$0xf]
    %v2032 = vunpack.c.l.b16 %v1968
    %v2033 = vunpack.c.l.b16 %v1969
    %v2034 = vunpack.c.l.b16 %v1970
    %v2035 = vunpack.c.l.b16 %v1971
    %v2036 = vunpack.c.l.b16 %v1972
    %v2037 = vunpack.c.l.b16 %v1973
    %v2038 = vunpack.c.l.b16 %v1974
    %v2039 = vunpack.c.l.b16 %v1975
    %v2040 = vunpack.c.l.b16 %v1976
    %v2041 = vunpack.c.l.b16 %v1977
    %v2042 = vunpack.c.l.b16 %v1978
    %v2043 = vunpack.c.l.b16 %v1979
    %v2044 = vunpack.c.l.b16 %v1980
    %v2045 = vunpack.c.l.b16 %v1981
    %v2046 = vunpack.c.l.b16 %v1982
    %v2047 = vunpack.c.l.b16 %v1983
    %v2048 = vunpack.c.l.b16 %v1984
    %v2049 = vunpack.c.l.b16 %v1985
    %v2050 = vunpack.c.l.b16 %v1986
    %v2051 = vunpack.c.l.b16 %v1987
    %v2052 = vunpack.c.l.b16 %v1988
    %v2053 = vunpack.c.l.b16 %v1989
    %v2054 = vunpack.c.l.b16 %v1990
    %v2055 = vunpack.c.l.b16 %v1991
    %v2056 = vunpack.c.l.b16 %v1992
    %v2057 = vunpack.c.l.b16 %v1993
    %v2058 = vunpack.c.l.b16 %v1994
    %v2059 = vunpack.c.l.b16 %v1995
    %v2060 = vunpack.c.l.b16 %v1996
    %v2061 = vunpack.c.l.b16 %v1997
    %v2062 = vunpack.c.l.b16 %v1998
    %v2063 = vunpack.c.l.b16 %v1999
    %v2064 = vpack.c.b16 %v2033, %v2032
    %v2065 = vpack.c.b16 %v2035, %v2034
    %v2066 = vpack.c.b16 %v2037, %v2036
    %v2067 = vpack.c.b16 %v2039, %v2038
    %v2068 = vpack.c.b16 %v2041, %v2040
    %v2069 = vpack.c.b16 %v2043, %v2042
    %v2070 = vpack.c.b16 %v2045, %v2044
    %v2071 = vpack.c.b16 %v2047, %v2046
    %v2072 = vpack.c.b16 %v2049, %v2048
    %v2073 = vpack.c.b16 %v2051, %v2050
    %v2074 = vpack.c.b16 %v2053, %v2052
    %v2075 = vpack.c.b16 %v2055, %v2054
    %v2076 = vpack.c.b16 %v2057, %v2056
    %v2077 = vpack.c.b16 %v2059, %v2058
    %v2078 = vpack.c.b16 %v2061, %v2060
    %v2079 = vpack.c.b16 %v2063, %v2062
    %2096 = vmatprep.subr.bf16.mxu0 0
    %2097 = vmatpush1.bf16.msra.mxu0 %v2064
    %2098 = vmatprep.subr.bf16.mxu0 0
    %2099 = vmatpush1.bf16.msra.mxu0 %v2065
    %2100 = vmatprep.subr.bf16.mxu0 0
    %2101 = vmatpush1.bf16.msra.mxu0 %v2066
    %2102 = vmatprep.subr.bf16.mxu0 0
    %2103 = vmatpush1.bf16.msra.mxu0 %v2067
    %2104 = vmatprep.subr.bf16.mxu0 0
    %2105 = vmatpush1.bf16.msra.mxu0 %v2068
    %2106 = vmatprep.subr.bf16.mxu0 0
    %2107 = vmatpush1.bf16.msra.mxu0 %v2069
    %2108 = vmatprep.subr.bf16.mxu0 0
    %2109 = vmatpush1.bf16.msra.mxu0 %v2070
    %2110 = vmatprep.subr.bf16.mxu0 0
    %2111 = vmatpush1.bf16.msra.mxu0 %v2071
    %2112 = vmatprep.subr.bf16.mxu0 0
    %2113 = vmatpush1.bf16.msra.mxu0 %v2072
    %2114 = vmatprep.subr.bf16.mxu0 0
    %2115 = vmatpush1.bf16.msra.mxu0 %v2073
    %2116 = vmatprep.subr.bf16.mxu0 0
    %2117 = vmatpush1.bf16.msra.mxu0 %v2074
    %2118 = vmatprep.subr.bf16.mxu0 0
    %2119 = vmatpush1.bf16.msra.mxu0 %v2075
    %2120 = vmatprep.subr.bf16.mxu0 0
    %2121 = vmatpush1.bf16.msra.mxu0 %v2076
    %2122 = vmatprep.subr.bf16.mxu0 0
    %2123 = vmatpush1.bf16.msra.mxu0 %v2077
    %2124 = vmatprep.subr.bf16.mxu0 0
    %2125 = vmatpush1.bf16.msra.mxu0 %v2078
    %2126 = vmatprep.subr.bf16.mxu0 0
    %2127 = vmatpush1.bf16.msra.mxu0 %v2079
    %2128 = vmatprep.mubr.bf16.mxu0 %v1841
    %2129 = vmatmul.mubr.bf16.gmra.mrb[0].mxu0 %v1840
    %v2130 = vpop.f32.mrb[0].mxu0
    %v2131 = vadd.f32 0.0, %v2130
    %v2132 = vpop.f32.mrb[0].mxu0
    %v2133 = vpop.f32.mrb[0].mxu0
    %v2134 = vadd.f32 0.0, %v2133
    %v2135 = vpop.f32.mrb[0].mxu0
    %2136 = vmatprep.mubr.bf16.mxu0 %v1843
    %2137 = vmatmul.mubr.bf16.gmra.mrb[0].mxu0 %v1842
    %v2138 = vpop.f32.mrb[0].mxu0
    %v2139 = vadd.f32 0.0, %v2138
    %v2140 = vpop.f32.mrb[0].mxu0
    %v2141 = vpop.f32.mrb[0].mxu0
    %v2142 = vadd.f32 0.0, %v2141
    %v2143 = vpop.f32.mrb[0].mxu0
    %2144 = vmatprep.mubr.bf16.mxu0 %v1845
    %2145 = vmatmul.mubr.bf16.gmra.mrb[0].mxu0 %v1844
    %v2146 = vpop.f32.mrb[0].mxu0
    %v2147 = vadd.f32 0.0, %v2146
    %v2148 = vpop.f32.mrb[0].mxu0
    %v2149 = vpop.f32.mrb[0].mxu0
    %v2150 = vadd.f32 0.0, %v2149
    %v2151 = vpop.f32.mrb[0].mxu0
    %2152 = vmatprep.mubr.bf16.mxu0 %v1847
    %2153 = vmatmul.mubr.bf16.gmra.mrb[0].mxu0 %v1846
    %v2154 = vpop.f32.mrb[0].mxu0
    %v2155 = vadd.f32 0.0, %v2154
    %v2156 = vpop.f32.mrb[0].mxu0
    %v2157 = vpop.f32.mrb[0].mxu0
    %v2158 = vadd.f32 0.0, %v2157
    %v2159 = vpop.f32.mrb[0].mxu0
    %2160 = vmatprep.mubr.bf16.mxu0 %v1849
    %2161 = vmatmul.mubr.bf16.gmra.mrb[0].mxu0 %v1848
    %v2162 = vpop.f32.mrb[0].mxu0
    %v2163 = vadd.f32 0.0, %v2162
    %v2164 = vpop.f32.mrb[0].mxu0
    %v2165 = vpop.f32.mrb[0].mxu0
    %v2166 = vadd.f32 0.0, %v2165
    %v2167 = vpop.f32.mrb[0].mxu0
    %2168 = vmatprep.mubr.bf16.mxu0 %v1851
    %2169 = vmatmul.mubr.bf16.gmra.mrb[0].mxu0 %v1850
    %v2170 = vpop.f32.mrb[0].mxu0
    %v2171 = vadd.f32 0.0, %v2170
    %v2172 = vpop.f32.mrb[0].mxu0
    %v2173 = vpop.f32.mrb[0].mxu0
    %v2174 = vadd.f32 0.0, %v2173
    %v2175 = vpop.f32.mrb[0].mxu0
    %2176 = vmatprep.mubr.bf16.mxu0 %v1853
    %2177 = vmatmul.mubr.bf16.gmra.mrb[0].mxu0 %v1852
    %v2178 = vpop.f32.mrb[0].mxu0
    %v2179 = vadd.f32 0.0, %v2178
    %v2180 = vpop.f32.mrb[0].mxu0
    %v2181 = vpop.f32.mrb[0].mxu0
    %v2182 = vadd.f32 0.0, %v2181
    %v2183 = vpop.f32.mrb[0].mxu0
    %2184 = vmatprep.mubr.bf16.mxu0 %v1855
    %2185 = vmatmul.mubr.bf16.gmra.mrb[0].mxu0 %v1854
    %v2186 = vpop.f32.mrb[0].mxu0
    %v2187 = vadd.f32 0.0, %v2186
    %v2188 = vpop.f32.mrb[0].mxu0
    %v2189 = vpop.f32.mrb[0].mxu0
    %v2190 = vadd.f32 0.0, %v2189
    %v2191 = vpop.f32.mrb[0].mxu0
    %2192 = vmatprep.mubr.bf16.mxu0 %v1857
    %2193 = vmatmul.mubr.bf16.gmra.mrb[0].mxu0 %v1856
    %v2194 = vpop.f32.mrb[0].mxu0
    %v2195 = vadd.f32 0.0, %v2194
    %v2196 = vpop.f32.mrb[0].mxu0
    %v2197 = vpop.f32.mrb[0].mxu0
    %v2198 = vadd.f32 0.0, %v2197
    %v2199 = vpop.f32.mrb[0].mxu0
    %2200 = vmatprep.mubr.bf16.mxu0 %v1859
    %2201 = vmatmul.mubr.bf16.gmra.mrb[0].mxu0 %v1858
    %v2202 = vpop.f32.mrb[0].mxu0
    %v2203 = vadd.f32 0.0, %v2202
    %v2204 = vpop.f32.mrb[0].mxu0
    %v2205 = vpop.f32.mrb[0].mxu0
    %v2206 = vadd.f32 0.0, %v2205
    %v2207 = vpop.f32.mrb[0].mxu0
    %2208 = vmatprep.mubr.bf16.mxu0 %v1861
    %2209 = vmatmul.mubr.bf16.gmra.mrb[0].mxu0 %v1860
    %v2210 = vpop.f32.mrb[0].mxu0
    %v2211 = vadd.f32 0.0, %v2210
    %v2212 = vpop.f32.mrb[0].mxu0
    %v2213 = vpop.f32.mrb[0].mxu0
    %v2214 = vadd.f32 0.0, %v2213
    %v2215 = vpop.f32.mrb[0].mxu0
    %2216 = vmatprep.mubr.bf16.mxu0 %v1863
    %2217 = vmatmul.mubr.bf16.gmra.mrb[0].mxu0 %v1862
    %v2218 = vpop.f32.mrb[0].mxu0
    %v2219 = vadd.f32 0.0, %v2218
    %v2220 = vpop.f32.mrb[0].mxu0
    %v2221 = vpop.f32.mrb[0].mxu0
    %v2222 = vadd.f32 0.0, %v2221
    %v2223 = vpop.f32.mrb[0].mxu0
    %2224 = vmatprep.mubr.bf16.mxu0 %v1865
    %2225 = vmatmul.mubr.bf16.gmra.mrb[0].mxu0 %v1864
    %v2226 = vpop.f32.mrb[0].mxu0
    %v2227 = vadd.f32 0.0, %v2226
    %v2228 = vpop.f32.mrb[0].mxu0
    %v2229 = vpop.f32.mrb[0].mxu0
    %v2230 = vadd.f32 0.0, %v2229
    %v2231 = vpop.f32.mrb[0].mxu0
    %2232 = vmatprep.mubr.bf16.mxu0 %v1867
    %2233 = vmatmul.mubr.bf16.gmra.mrb[0].mxu0 %v1866
    %v2234 = vpop.f32.mrb[0].mxu0
    %v2235 = vadd.f32 0.0, %v2234
    %v2236 = vpop.f32.mrb[0].mxu0
    %v2237 = vpop.f32.mrb[0].mxu0
    %v2238 = vadd.f32 0.0, %v2237
    %v2239 = vpop.f32.mrb[0].mxu0
    %2240 = vmatprep.mubr.bf16.mxu0 %v1869
    %2241 = vmatmul.mubr.bf16.gmra.mrb[0].mxu0 %v1868
    %v2242 = vpop.f32.mrb[0].mxu0
    %v2243 = vadd.f32 0.0, %v2242
    %v2244 = vpop.f32.mrb[0].mxu0
    %v2245 = vpop.f32.mrb[0].mxu0
    %v2246 = vadd.f32 0.0, %v2245
    %v2247 = vpop.f32.mrb[0].mxu0
    %2248 = vmatprep.mubr.bf16.mxu0 %v1871
    %2249 = vmatmul.mubr.bf16.gmra.mrb[0].mxu0 %v1870
    %v2250 = vpop.f32.mrb[0].mxu0
    %v2251 = vadd.f32 0.0, %v2250
    %v2252 = vpop.f32.mrb[0].mxu0
    %v2253 = vpop.f32.mrb[0].mxu0
    %v2254 = vadd.f32 0.0, %v2253
    %v2255 = vpop.f32.mrb[0].mxu0
    %2256 = vmatprep.mubr.bf16.mxu0 %v1873
    %2257 = vmatmul.mubr.bf16.gmra.mrb[0].mxu0 %v1872
    %v2258 = vpop.f32.mrb[0].mxu0
    %v2259 = vadd.f32 0.0, %v2258
    %v2260 = vpop.f32.mrb[0].mxu0
    %v2261 = vpop.f32.mrb[0].mxu0
    %v2262 = vadd.f32 0.0, %v2261
    %v2263 = vpop.f32.mrb[0].mxu0
    %2264 = vmatprep.mubr.bf16.mxu0 %v1875
    %2265 = vmatmul.mubr.bf16.gmra.mrb[0].mxu0 %v1874
    %v2266 = vpop.f32.mrb[0].mxu0
    %v2267 = vadd.f32 0.0, %v2266
    %v2268 = vpop.f32.mrb[0].mxu0
    %v2269 = vpop.f32.mrb[0].mxu0
    %v2270 = vadd.f32 0.0, %v2269
    %v2271 = vpop.f32.mrb[0].mxu0
    %2272 = vmatprep.mubr.bf16.mxu0 %v1877
    %2273 = vmatmul.mubr.bf16.gmra.mrb[0].mxu0 %v1876
    %v2274 = vpop.f32.mrb[0].mxu0
    %v2275 = vadd.f32 0.0, %v2274
    %v2276 = vpop.f32.mrb[0].mxu0
    %v2277 = vpop.f32.mrb[0].mxu0
    %v2278 = vadd.f32 0.0, %v2277
    %v2279 = vpop.f32.mrb[0].mxu0
    %2280 = vmatprep.mubr.bf16.mxu0 %v1879
    %2281 = vmatmul.mubr.bf16.gmra.mrb[0].mxu0 %v1878
    %v2282 = vpop.f32.mrb[0].mxu0
    %v2283 = vadd.f32 0.0, %v2282
    %v2284 = vpop.f32.mrb[0].mxu0
    %v2285 = vpop.f32.mrb[0].mxu0
    %v2286 = vadd.f32 0.0, %v2285
    %v2287 = vpop.f32.mrb[0].mxu0
    %2288 = vmatprep.mubr.bf16.mxu0 %v1881
    %2289 = vmatmul.mubr.bf16.gmra.mrb[0].mxu0 %v1880
    %v2290 = vpop.f32.mrb[0].mxu0
    %v2291 = vadd.f32 0.0, %v2290
    %v2292 = vpop.f32.mrb[0].mxu0
    %v2293 = vpop.f32.mrb[0].mxu0
    %v2294 = vadd.f32 0.0, %v2293
    %v2295 = vpop.f32.mrb[0].mxu0
    %2296 = vmatprep.mubr.bf16.mxu0 %v1883
    %2297 = vmatmul.mubr.bf16.gmra.mrb[0].mxu0 %v1882
    %v2298 = vpop.f32.mrb[0].mxu0
    %v2299 = vadd.f32 0.0, %v2298
    %v2300 = vpop.f32.mrb[0].mxu0
    %v2301 = vpop.f32.mrb[0].mxu0
    %v2302 = vadd.f32 0.0, %v2301
    %v2303 = vpop.f32.mrb[0].mxu0
    %2304 = vmatprep.mubr.bf16.mxu0 %v1885
    %2305 = vmatmul.mubr.bf16.gmra.mrb[0].mxu0 %v1884
    %v2306 = vpop.f32.mrb[0].mxu0
    %v2307 = vadd.f32 0.0, %v2306
    %v2308 = vpop.f32.mrb[0].mxu0
    %v2309 = vpop.f32.mrb[0].mxu0
    %v2310 = vadd.f32 0.0, %v2309
    %v2311 = vpop.f32.mrb[0].mxu0
    %2312 = vmatprep.mubr.bf16.mxu0 %v1887
    %2313 = vmatmul.mubr.bf16.gmra.mrb[0].mxu0 %v1886
    %v2314 = vpop.f32.mrb[0].mxu0
    %v2315 = vadd.f32 0.0, %v2314
    %v2316 = vpop.f32.mrb[0].mxu0
    %v2317 = vpop.f32.mrb[0].mxu0
    %v2318 = vadd.f32 0.0, %v2317
    %v2319 = vpop.f32.mrb[0].mxu0
    %2320 = vmatprep.mubr.bf16.mxu0 %v1889
    %2321 = vmatmul.mubr.bf16.gmra.mrb[0].mxu0 %v1888
    %v2322 = vpop.f32.mrb[0].mxu0
    %v2323 = vadd.f32 0.0, %v2322
    %v2324 = vpop.f32.mrb[0].mxu0
    %v2325 = vpop.f32.mrb[0].mxu0
    %v2326 = vadd.f32 0.0, %v2325
    %v2327 = vpop.f32.mrb[0].mxu0
    %2328 = vmatprep.mubr.bf16.mxu0 %v1891
    %2329 = vmatmul.mubr.bf16.gmra.mrb[0].mxu0 %v1890
    %v2330 = vpop.f32.mrb[0].mxu0
    %v2331 = vadd.f32 0.0, %v2330
    %v2332 = vpop.f32.mrb[0].mxu0
    %v2333 = vpop.f32.mrb[0].mxu0
    %v2334 = vadd.f32 0.0, %v2333
    %v2335 = vpop.f32.mrb[0].mxu0
    %2336 = vmatprep.mubr.bf16.mxu0 %v1893
    %2337 = vmatmul.mubr.bf16.gmra.mrb[0].mxu0 %v1892
    %v2338 = vpop.f32.mrb[0].mxu0
    %v2339 = vadd.f32 0.0, %v2338
    %v2340 = vpop.f32.mrb[0].mxu0
    %v2341 = vpop.f32.mrb[0].mxu0
    %v2342 = vadd.f32 0.0, %v2341
    %v2343 = vpop.f32.mrb[0].mxu0
    %2344 = vmatprep.mubr.bf16.mxu0 %v1895
    %2345 = vmatmul.mubr.bf16.gmra.mrb[0].mxu0 %v1894
    %v2346 = vpop.f32.mrb[0].mxu0
    %v2347 = vadd.f32 0.0, %v2346
    %v2348 = vpop.f32.mrb[0].mxu0
    %v2349 = vpop.f32.mrb[0].mxu0
    %v2350 = vadd.f32 0.0, %v2349
    %v2351 = vpop.f32.mrb[0].mxu0
    %2352 = vmatprep.mubr.bf16.mxu0 %v1897
    %2353 = vmatmul.mubr.bf16.gmra.mrb[0].mxu0 %v1896
    %v2354 = vpop.f32.mrb[0].mxu0
    %v2355 = vadd.f32 0.0, %v2354
    %v2356 = vpop.f32.mrb[0].mxu0
    %v2357 = vpop.f32.mrb[0].mxu0
    %v2358 = vadd.f32 0.0, %v2357
    %v2359 = vpop.f32.mrb[0].mxu0
    %2360 = vmatprep.mubr.bf16.mxu0 %v1899
    %2361 = vmatmul.mubr.bf16.gmra.mrb[0].mxu0 %v1898
    %v2362 = vpop.f32.mrb[0].mxu0
    %v2363 = vadd.f32 0.0, %v2362
    %v2364 = vpop.f32.mrb[0].mxu0
    %v2365 = vpop.f32.mrb[0].mxu0
    %v2366 = vadd.f32 0.0, %v2365
    %v2367 = vpop.f32.mrb[0].mxu0
    %2368 = vmatprep.mubr.bf16.mxu0 %v1901
    %2369 = vmatmul.mubr.bf16.gmra.mrb[0].mxu0 %v1900
    %v2370 = vpop.f32.mrb[0].mxu0
    %v2371 = vadd.f32 0.0, %v2370
    %v2372 = vpop.f32.mrb[0].mxu0
    %v2373 = vpop.f32.mrb[0].mxu0
    %v2374 = vadd.f32 0.0, %v2373
    %v2375 = vpop.f32.mrb[0].mxu0
    %2376 = vmatprep.mubr.bf16.mxu0 %v1903
    %2377 = vmatmul.mubr.bf16.gmra.mrb[0].mxu0 %v1902
    %v2378 = vpop.f32.mrb[0].mxu0
    %v2379 = vadd.f32 0.0, %v2378
    %v2380 = vpop.f32.mrb[0].mxu0
    %v2381 = vpop.f32.mrb[0].mxu0
    %v2382 = vadd.f32 0.0, %v2381
    %v2383 = vpop.f32.mrb[0].mxu0
    %2384 = vdwg.mxu0
    %v2385 = vadd.f32 %v1904, %v2131
    %v2386 = vadd.f32 %v1905, %v2134
    %v2387 = vadd.f32 %v1906, %v2139
    %v2388 = vadd.f32 %v1907, %v2142
    %v2389 = vadd.f32 %v1908, %v2147
    %v2390 = vadd.f32 %v1909, %v2150
    %v2391 = vadd.f32 %v1910, %v2155
    %v2392 = vadd.f32 %v1911, %v2158
    %v2393 = vadd.f32 %v1912, %v2163
    %v2394 = vadd.f32 %v1913, %v2166
    %v2395 = vadd.f32 %v1914, %v2171
    %v2396 = vadd.f32 %v1915, %v2174
    %v2397 = vadd.f32 %v1916, %v2179
    %v2398 = vadd.f32 %v1917, %v2182
    %v2399 = vadd.f32 %v1918, %v2187
    %v2400 = vadd.f32 %v1919, %v2190
    %v2401 = vadd.f32 %v1920, %v2195
    %v2402 = vadd.f32 %v1921, %v2198
    %v2403 = vadd.f32 %v1922, %v2203
    %v2404 = vadd.f32 %v1923, %v2206
    %v2405 = vadd.f32 %v1924, %v2211
    %v2406 = vadd.f32 %v1925, %v2214
    %v2407 = vadd.f32 %v1926, %v2219
    %v2408 = vadd.f32 %v1927, %v2222
    %v2409 = vadd.f32 %v1928, %v2227
    %v2410 = vadd.f32 %v1929, %v2230
    %v2411 = vadd.f32 %v1930, %v2235
    %v2412 = vadd.f32 %v1931, %v2238
    %v2413 = vadd.f32 %v1932, %v2243
    %v2414 = vadd.f32 %v1933, %v2246
    %v2415 = vadd.f32 %v1934, %v2251
    %v2416 = vadd.f32 %v1935, %v2254
    %v2417 = vadd.f32 %v1936, %v2259
    %v2418 = vadd.f32 %v1937, %v2262
    %v2419 = vadd.f32 %v1938, %v2267
    %v2420 = vadd.f32 %v1939, %v2270
    %v2421 = vadd.f32 %v1940, %v2275
    %v2422 = vadd.f32 %v1941, %v2278
    %v2423 = vadd.f32 %v1942, %v2283
    %v2424 = vadd.f32 %v1943, %v2286
    %v2425 = vadd.f32 %v1944, %v2291
    %v2426 = vadd.f32 %v1945, %v2294
    %v2427 = vadd.f32 %v1946, %v2299
    %v2428 = vadd.f32 %v1947, %v2302
    %v2429 = vadd.f32 %v1948, %v2307
    %v2430 = vadd.f32 %v1949, %v2310
    %v2431 = vadd.f32 %v1950, %v2315
    %v2432 = vadd.f32 %v1951, %v2318
    %v2433 = vadd.f32 %v1952, %v2323
    %v2434 = vadd.f32 %v1953, %v2326
    %v2435 = vadd.f32 %v1954, %v2331
    %v2436 = vadd.f32 %v1955, %v2334
    %v2437 = vadd.f32 %v1956, %v2339
    %v2438 = vadd.f32 %v1957, %v2342
    %v2439 = vadd.f32 %v1958, %v2347
    %v2440 = vadd.f32 %v1959, %v2350
    %v2441 = vadd.f32 %v1960, %v2355
    %v2442 = vadd.f32 %v1961, %v2358
    %v2443 = vadd.f32 %v1962, %v2363
    %v2444 = vadd.f32 %v1963, %v2366
    %v2445 = vadd.f32 %v1964, %v2371
    %v2446 = vadd.f32 %v1965, %v2374
    %v2447 = vadd.f32 %v1966, %v2379
    %v2448 = vadd.f32 %v1967, %v2382
    %2449 = vst [vmem:[#allocation2] sm:$0xff] %v2385
    %2450 = vst [vmem:[#allocation2 + $0x8] sm:$0xff] %v2386
    %2451 = vst [vmem:[#allocation2 + $0x10] sm:$0xff] %v2387
    %2452 = vst [vmem:[#allocation2 + $0x18] sm:$0xff] %v2388
    %2453 = vst [vmem:[#allocation2 + $0x20] sm:$0xff] %v2389
    %2454 = vst [vmem:[#allocation2 + $0x28] sm:$0xff] %v2390
    %2455 = vst [vmem:[#allocation2 + $0x30] sm:$0xff] %v2391
    %2456 = vst [vmem:[#allocation2 + $0x38] sm:$0xff] %v2392
    %2457 = vst [vmem:[#allocation2 + $0x40] sm:$0xff] %v2393
    %2458 = vst [vmem:[#allocation2 + $0x48] sm:$0xff] %v2394
    %2459 = vst [vmem:[#allocation2 + $0x50] sm:$0xff] %v2395
    %2460 = vst [vmem:[#allocation2 + $0x58] sm:$0xff] %v2396
    %2461 = vst [vmem:[#allocation2 + $0x60] sm:$0xff] %v2397
    %2462 = vst [vmem:[#allocation2 + $0x68] sm:$0xff] %v2398
    %2463 = vst [vmem:[#allocation2 + $0x70] sm:$0xff] %v2399
    %2464 = vst [vmem:[#allocation2 + $0x78] sm:$0xff] %v2400
    %2465 = vst [vmem:[#allocation2 + $0x80] sm:$0xff] %v2401
    %2466 = vst [vmem:[#allocation2 + $0x88] sm:$0xff] %v2402
    %2467 = vst [vmem:[#allocation2 + $0x90] sm:$0xff] %v2403
    %2468 = vst [vmem:[#allocation2 + $0x98] sm:$0xff] %v2404
    %2469 = vst [vmem:[#allocation2 + $0xa0] sm:$0xff] %v2405
    %2470 = vst [vmem:[#allocation2 + $0xa8] sm:$0xff] %v2406
    %2471 = vst [vmem:[#allocation2 + $0xb0] sm:$0xff] %v2407
    %2472 = vst [vmem:[#allocation2 + $0xb8] sm:$0xff] %v2408
    %2473 = vst [vmem:[#allocation2 + $0xc0] sm:$0xff] %v2409
    %2474 = vst [vmem:[#allocation2 + $0xc8] sm:$0xff] %v2410
    %2475 = vst [vmem:[#allocation2 + $0xd0] sm:$0xff] %v2411
    %2476 = vst [vmem:[#allocation2 + $0xd8] sm:$0xff] %v2412
    %2477 = vst [vmem:[#allocation2 + $0xe0] sm:$0xff] %v2413
    %2478 = vst [vmem:[#allocation2 + $0xe8] sm:$0xff] %v2414
    %2479 = vst [vmem:[#allocation2 + $0xf0] sm:$0xff] %v2415
    %2480 = vst [vmem:[#allocation2 + $0xf8] sm:$0xff] %v2416
    %2481 = vst [vmem:[#allocation2 + $0x100] sm:$0xff] %v2417
    %2482 = vst [vmem:[#allocation2 + $0x108] sm:$0xff] %v2418
    %2483 = vst [vmem:[#allocation2 + $0x110] sm:$0xff] %v2419
    %2484 = vst [vmem:[#allocation2 + $0x118] sm:$0xff] %v2420
    %2485 = vst [vmem:[#allocation2 + $0x120] sm:$0xff] %v2421
    %2486 = vst [vmem:[#allocation2 + $0x128] sm:$0xff] %v2422
    %2487 = vst [vmem:[#allocation2 + $0x130] sm:$0xff] %v2423
    %2488 = vst [vmem:[#allocation2 + $0x138] sm:$0xff] %v2424
    %2489 = vst [vmem:[#allocation2 + $0x140] sm:$0xff] %v2425
    %2490 = vst [vmem:[#allocation2 + $0x148] sm:$0xff] %v2426
    %2491 = vst [vmem:[#allocation2 + $0x150] sm:$0xff] %v2427
    %2492 = vst [vmem:[#allocation2 + $0x158] sm:$0xff] %v2428
    %2493 = vst [vmem:[#allocation2 + $0x160] sm:$0xff] %v2429
    %2494 = vst [vmem:[#allocation2 + $0x168] sm:$0xff] %v2430
    %2495 = vst [vmem:[#allocation2 + $0x170] sm:$0xff] %v2431
    %2496 = vst [vmem:[#allocation2 + $0x178] sm:$0xff] %v2432
    %2497 = vst [vmem:[#allocation2 + $0x180] sm:$0xff] %v2433
    %2498 = vst [vmem:[#allocation2 + $0x188] sm:$0xff] %v2434
    %2499 = vst [vmem:[#allocation2 + $0x190] sm:$0xff] %v2435
    %2500 = vst [vmem:[#allocation2 + $0x198] sm:$0xff] %v2436
    %2501 = vst [vmem:[#allocation2 + $0x1a0] sm:$0xff] %v2437
    %2502 = vst [vmem:[#allocation2 + $0x1a8] sm:$0xff] %v2438
    %2503 = vst [vmem:[#allocation2 + $0x1b0] sm:$0xff] %v2439
    %2504 = vst [vmem:[#allocation2 + $0x1b8] sm:$0xff] %v2440
    %2505 = vst [vmem:[#allocation2 + $0x1c0] sm:$0xff] %v2441
    %2506 = vst [vmem:[#allocation2 + $0x1c8] sm:$0xff] %v2442
    %2507 = vst [vmem:[#allocation2 + $0x1d0] sm:$0xff] %v2443
    %2508 = vst [vmem:[#allocation2 + $0x1d8] sm:$0xff] %v2444
    %2509 = vst [vmem:[#allocation2 + $0x1e0] sm:$0xff] %v2445
    %2510 = vst [vmem:[#allocation2 + $0x1e8] sm:$0xff] %v2446
    %2511 = vst [vmem:[#allocation2 + $0x1f0] sm:$0xff] %v2447
    %2512 = vst [vmem:[#allocation2 + $0x1f8] sm:$0xff] %v2448
    // Predicated region
    $region38: #{tpu_custom_call.1} parent=1 // pred_check
      %p2513 = pneg %p63
    $region39: #{tpu_custom_call.1} parent=1 // pred_check_branch
      %2515 = sbr.rel (%p2513) target = $region41
    $region40: #{tpu_custom_call.1} parent=1 // pred_region
      %v2516 = vld [vmem:[#allocation2] sm:$0xff]
      %v2517 = vld [vmem:[#allocation2 + $0x8] sm:$0xff]
      %v2518 = vld [vmem:[#allocation2 + $0x10] sm:$0xff]
      %v2519 = vld [vmem:[#allocation2 + $0x18] sm:$0xff]
      %v2520 = vld [vmem:[#allocation2 + $0x20] sm:$0xff]
      %v2521 = vld [vmem:[#allocation2 + $0x28] sm:$0xff]
      %v2522 = vld [vmem:[#allocation2 + $0x30] sm:$0xff]
      %v2523 = vld [vmem:[#allocation2 + $0x38] sm:$0xff]
      %v2524 = vld [vmem:[#allocation2 + $0x40] sm:$0xff]
      %v2525 = vld [vmem:[#allocation2 + $0x48] sm:$0xff]
      %v2526 = vld [vmem:[#allocation2 + $0x50] sm:$0xff]
      %v2527 = vld [vmem:[#allocation2 + $0x58] sm:$0xff]
      %v2528 = vld [vmem:[#allocation2 + $0x60] sm:$0xff]
      %v2529 = vld [vmem:[#allocation2 + $0x68] sm:$0xff]
      %v2530 = vld [vmem:[#allocation2 + $0x70] sm:$0xff]
      %v2531 = vld [vmem:[#allocation2 + $0x78] sm:$0xff]
      %v2532 = vld [vmem:[#allocation2 + $0x80] sm:$0xff]
      %v2533 = vld [vmem:[#allocation2 + $0x88] sm:$0xff]
      %v2534 = vld [vmem:[#allocation2 + $0x90] sm:$0xff]
      %v2535 = vld [vmem:[#allocation2 + $0x98] sm:$0xff]
      %v2536 = vld [vmem:[#allocation2 + $0xa0] sm:$0xff]
      %v2537 = vld [vmem:[#allocation2 + $0xa8] sm:$0xff]
      %v2538 = vld [vmem:[#allocation2 + $0xb0] sm:$0xff]
      %v2539 = vld [vmem:[#allocation2 + $0xb8] sm:$0xff]
      %v2540 = vld [vmem:[#allocation2 + $0xc0] sm:$0xff]
      %v2541 = vld [vmem:[#allocation2 + $0xc8] sm:$0xff]
      %v2542 = vld [vmem:[#allocation2 + $0xd0] sm:$0xff]
      %v2543 = vld [vmem:[#allocation2 + $0xd8] sm:$0xff]
      %v2544 = vld [vmem:[#allocation2 + $0xe0] sm:$0xff]
      %v2545 = vld [vmem:[#allocation2 + $0xe8] sm:$0xff]
      %v2546 = vld [vmem:[#allocation2 + $0xf0] sm:$0xff]
      %v2547 = vld [vmem:[#allocation2 + $0xf8] sm:$0xff]
      %v2548 = vld [vmem:[#allocation2 + $0x100] sm:$0xff]
      %v2549 = vld [vmem:[#allocation2 + $0x108] sm:$0xff]
      %v2550 = vld [vmem:[#allocation2 + $0x110] sm:$0xff]
      %v2551 = vld [vmem:[#allocation2 + $0x118] sm:$0xff]
      %v2552 = vld [vmem:[#allocation2 + $0x120] sm:$0xff]
      %v2553 = vld [vmem:[#allocation2 + $0x128] sm:$0xff]
      %v2554 = vld [vmem:[#allocation2 + $0x130] sm:$0xff]
      %v2555 = vld [vmem:[#allocation2 + $0x138] sm:$0xff]
      %v2556 = vld [vmem:[#allocation2 + $0x140] sm:$0xff]
      %v2557 = vld [vmem:[#allocation2 + $0x148] sm:$0xff]
      %v2558 = vld [vmem:[#allocation2 + $0x150] sm:$0xff]
      %v2559 = vld [vmem:[#allocation2 + $0x158] sm:$0xff]
      %v2560 = vld [vmem:[#allocation2 + $0x160] sm:$0xff]
      %v2561 = vld [vmem:[#allocation2 + $0x168] sm:$0xff]
      %v2562 = vld [vmem:[#allocation2 + $0x170] sm:$0xff]
      %v2563 = vld [vmem:[#allocation2 + $0x178] sm:$0xff]
      %v2564 = vld [vmem:[#allocation2 + $0x180] sm:$0xff]
      %v2565 = vld [vmem:[#allocation2 + $0x188] sm:$0xff]
      %v2566 = vld [vmem:[#allocation2 + $0x190] sm:$0xff]
      %v2567 = vld [vmem:[#allocation2 + $0x198] sm:$0xff]
      %v2568 = vld [vmem:[#allocation2 + $0x1a0] sm:$0xff]
      %v2569 = vld [vmem:[#allocation2 + $0x1a8] sm:$0xff]
      %v2570 = vld [vmem:[#allocation2 + $0x1b0] sm:$0xff]
      %v2571 = vld [vmem:[#allocation2 + $0x1b8] sm:$0xff]
      %v2572 = vld [vmem:[#allocation2 + $0x1c0] sm:$0xff]
      %v2573 = vld [vmem:[#allocation2 + $0x1c8] sm:$0xff]
      %v2574 = vld [vmem:[#allocation2 + $0x1d0] sm:$0xff]
      %v2575 = vld [vmem:[#allocation2 + $0x1d8] sm:$0xff]
      %v2576 = vld [vmem:[#allocation2 + $0x1e0] sm:$0xff]
      %v2577 = vld [vmem:[#allocation2 + $0x1e8] sm:$0xff]
      %v2578 = vld [vmem:[#allocation2 + $0x1f0] sm:$0xff]
      %v2579 = vld [vmem:[#allocation2 + $0x1f8] sm:$0xff]
      %v2580 = vld [vmem:[%s4] sm:$0x1]
      %v2582 = vlaneseq
      %v2583 = vshrl.u32 %v2582, 7
      %v2584 = vsub.s32 0, %v2583
      %v2585 = vrot.slane %v2580, %v2584
      %v2587 = vadd.f32 %v2516, %v2585
      %v2588 = vadd.f32 %v2517, %v2585
      %v2589 = vadd.f32 %v2518, %v2585
      %v2590 = vadd.f32 %v2519, %v2585
      %v2591 = vadd.f32 %v2520, %v2585
      %v2592 = vadd.f32 %v2521, %v2585
      %v2593 = vadd.f32 %v2522, %v2585
      %v2594 = vadd.f32 %v2523, %v2585
      %v2595 = vadd.f32 %v2524, %v2585
      %v2596 = vadd.f32 %v2525, %v2585
      %v2597 = vadd.f32 %v2526, %v2585
      %v2598 = vadd.f32 %v2527, %v2585
      %v2599 = vadd.f32 %v2528, %v2585
      %v2600 = vadd.f32 %v2529, %v2585
      %v2601 = vadd.f32 %v2530, %v2585
      %v2602 = vadd.f32 %v2531, %v2585
      %v2603 = vadd.f32 %v2532, %v2585
      %v2604 = vadd.f32 %v2533, %v2585
      %v2605 = vadd.f32 %v2534, %v2585
      %v2606 = vadd.f32 %v2535, %v2585
      %v2607 = vadd.f32 %v2536, %v2585
      %v2608 = vadd.f32 %v2537, %v2585
      %v2609 = vadd.f32 %v2538, %v2585
      %v2610 = vadd.f32 %v2539, %v2585
      %v2611 = vadd.f32 %v2540, %v2585
      %v2612 = vadd.f32 %v2541, %v2585
      %v2613 = vadd.f32 %v2542, %v2585
      %v2614 = vadd.f32 %v2543, %v2585
      %v2615 = vadd.f32 %v2544, %v2585
      %v2616 = vadd.f32 %v2545, %v2585
      %v2617 = vadd.f32 %v2546, %v2585
      %v2618 = vadd.f32 %v2547, %v2585
      %v2619 = vadd.f32 %v2548, %v2585
      %v2620 = vadd.f32 %v2549, %v2585
      %v2621 = vadd.f32 %v2550, %v2585
      %v2622 = vadd.f32 %v2551, %v2585
      %v2623 = vadd.f32 %v2552, %v2585
      %v2624 = vadd.f32 %v2553, %v2585
      %v2625 = vadd.f32 %v2554, %v2585
      %v2626 = vadd.f32 %v2555, %v2585
      %v2627 = vadd.f32 %v2556, %v2585
      %v2628 = vadd.f32 %v2557, %v2585
      %v2629 = vadd.f32 %v2558, %v2585
      %v2630 = vadd.f32 %v2559, %v2585
      %v2631 = vadd.f32 %v2560, %v2585
      %v2632 = vadd.f32 %v2561, %v2585
      %v2633 = vadd.f32 %v2562, %v2585
      %v2634 = vadd.f32 %v2563, %v2585
      %v2635 = vadd.f32 %v2564, %v2585
      %v2636 = vadd.f32 %v2565, %v2585
      %v2637 = vadd.f32 %v2566, %v2585
      %v2638 = vadd.f32 %v2567, %v2585
      %v2639 = vadd.f32 %v2568, %v2585
      %v2640 = vadd.f32 %v2569, %v2585
      %v2641 = vadd.f32 %v2570, %v2585
      %v2642 = vadd.f32 %v2571, %v2585
      %v2643 = vadd.f32 %v2572, %v2585
      %v2644 = vadd.f32 %v2573, %v2585
      %v2645 = vadd.f32 %v2574, %v2585
      %v2646 = vadd.f32 %v2575, %v2585
      %v2647 = vadd.f32 %v2576, %v2585
      %v2648 = vadd.f32 %v2577, %v2585
      %v2649 = vadd.f32 %v2578, %v2585
      %v2650 = vadd.f32 %v2579, %v2585
      %v2651 = vpack.c.bf16 %v2588, %v2587
      %v2652 = vpack.c.bf16 %v2590, %v2589
      %v2653 = vpack.c.bf16 %v2592, %v2591
      %v2654 = vpack.c.bf16 %v2594, %v2593
      %v2655 = vpack.c.bf16 %v2596, %v2595
      %v2656 = vpack.c.bf16 %v2598, %v2597
      %v2657 = vpack.c.bf16 %v2600, %v2599
      %v2658 = vpack.c.bf16 %v2602, %v2601
      %v2659 = vpack.c.bf16 %v2604, %v2603
      %v2660 = vpack.c.bf16 %v2606, %v2605
      %v2661 = vpack.c.bf16 %v2608, %v2607
      %v2662 = vpack.c.bf16 %v2610, %v2609
      %v2663 = vpack.c.bf16 %v2612, %v2611
      %v2664 = vpack.c.bf16 %v2614, %v2613
      %v2665 = vpack.c.bf16 %v2616, %v2615
      %v2666 = vpack.c.bf16 %v2618, %v2617
      %v2667 = vpack.c.bf16 %v2620, %v2619
      %v2668 = vpack.c.bf16 %v2622, %v2621
      %v2669 = vpack.c.bf16 %v2624, %v2623
      %v2670 = vpack.c.bf16 %v2626, %v2625
      %v2671 = vpack.c.bf16 %v2628, %v2627
      %v2672 = vpack.c.bf16 %v2630, %v2629
      %v2673 = vpack.c.bf16 %v2632, %v2631
      %v2674 = vpack.c.bf16 %v2634, %v2633
      %v2675 = vpack.c.bf16 %v2636, %v2635
      %v2676 = vpack.c.bf16 %v2638, %v2637
      %v2677 = vpack.c.bf16 %v2640, %v2639
      %v2678 = vpack.c.bf16 %v2642, %v2641
      %v2679 = vpack.c.bf16 %v2644, %v2643
      %v2680 = vpack.c.bf16 %v2646, %v2645
      %v2681 = vpack.c.bf16 %v2648, %v2647
      %v2682 = vpack.c.bf16 %v2650, %v2649
      %v2715 = vunpack.c.l.b16 %v2651
      %v2716 = vunpack.c.h.b16 %v2651
      %v2717 = vunpack.c.l.b16 %v2652
      %v2718 = vunpack.c.h.b16 %v2652
      %v2719 = vunpack.c.l.b16 %v2653
      %v2720 = vunpack.c.h.b16 %v2653
      %v2721 = vunpack.c.l.b16 %v2654
      %v2722 = vunpack.c.h.b16 %v2654
      %v2723 = vunpack.c.l.b16 %v2655
      %v2724 = vunpack.c.h.b16 %v2655
      %v2725 = vunpack.c.l.b16 %v2656
      %v2726 = vunpack.c.h.b16 %v2656
      %v2727 = vunpack.c.l.b16 %v2657
      %v2728 = vunpack.c.h.b16 %v2657
      %v2729 = vunpack.c.l.b16 %v2658
      %v2730 = vunpack.c.h.b16 %v2658
      %v2731 = vunpack.c.l.b16 %v2659
      %v2732 = vunpack.c.h.b16 %v2659
      %v2733 = vunpack.c.l.b16 %v2660
      %v2734 = vunpack.c.h.b16 %v2660
      %v2735 = vunpack.c.l.b16 %v2661
      %v2736 = vunpack.c.h.b16 %v2661
      %v2737 = vunpack.c.l.b16 %v2662
      %v2738 = vunpack.c.h.b16 %v2662
      %v2739 = vunpack.c.l.b16 %v2663
      %v2740 = vunpack.c.h.b16 %v2663
      %v2741 = vunpack.c.l.b16 %v2664
      %v2742 = vunpack.c.h.b16 %v2664
      %v2743 = vunpack.c.l.b16 %v2665
      %v2744 = vunpack.c.h.b16 %v2665
      %v2745 = vunpack.c.l.b16 %v2666
      %v2746 = vunpack.c.h.b16 %v2666
      %v2747 = vunpack.c.l.b16 %v2667
      %v2748 = vunpack.c.h.b16 %v2667
      %v2749 = vunpack.c.l.b16 %v2668
      %v2750 = vunpack.c.h.b16 %v2668
      %v2751 = vunpack.c.l.b16 %v2669
      %v2752 = vunpack.c.h.b16 %v2669
      %v2753 = vunpack.c.l.b16 %v2670
      %v2754 = vunpack.c.h.b16 %v2670
      %v2755 = vunpack.c.l.b16 %v2671
      %v2756 = vunpack.c.h.b16 %v2671
      %v2757 = vunpack.c.l.b16 %v2672
      %v2758 = vunpack.c.h.b16 %v2672
      %v2759 = vunpack.c.l.b16 %v2673
      %v2760 = vunpack.c.h.b16 %v2673
      %v2761 = vunpack.c.l.b16 %v2674
      %v2762 = vunpack.c.h.b16 %v2674
      %v2763 = vunpack.c.l.b16 %v2675
      %v2764 = vunpack.c.h.b16 %v2675
      %v2765 = vunpack.c.l.b16 %v2676
      %v2766 = vunpack.c.h.b16 %v2676
      %v2767 = vunpack.c.l.b16 %v2677
      %v2768 = vunpack.c.h.b16 %v2677
      %v2769 = vunpack.c.l.b16 %v2678
      %v2770 = vunpack.c.h.b16 %v2678
      %v2771 = vunpack.c.l.b16 %v2679
      %v2772 = vunpack.c.h.b16 %v2679
      %v2773 = vunpack.c.l.b16 %v2680
      %v2774 = vunpack.c.h.b16 %v2680
      %v2775 = vunpack.c.l.b16 %v2681
      %v2776 = vunpack.c.h.b16 %v2681
      %v2777 = vunpack.c.l.b16 %v2682
      %v2778 = vunpack.c.h.b16 %v2682
      %v2779 = vpack.c.b16 %v2715, %v2715
      %v2780 = vpack.c.b16 %v2716, %v2716
      %v2781 = vpack.c.b16 %v2717, %v2717
      %v2782 = vpack.c.b16 %v2718, %v2718
      %v2783 = vpack.c.b16 %v2719, %v2719
      %v2784 = vpack.c.b16 %v2720, %v2720
      %v2785 = vpack.c.b16 %v2721, %v2721
      %v2786 = vpack.c.b16 %v2722, %v2722
      %v2787 = vpack.c.b16 %v2723, %v2723
      %v2788 = vpack.c.b16 %v2724, %v2724
      %v2789 = vpack.c.b16 %v2725, %v2725
      %v2790 = vpack.c.b16 %v2726, %v2726
      %v2791 = vpack.c.b16 %v2727, %v2727
      %v2792 = vpack.c.b16 %v2728, %v2728
      %v2793 = vpack.c.b16 %v2729, %v2729
      %v2794 = vpack.c.b16 %v2730, %v2730
      %v2795 = vpack.c.b16 %v2731, %v2731
      %v2796 = vpack.c.b16 %v2732, %v2732
      %v2797 = vpack.c.b16 %v2733, %v2733
      %v2798 = vpack.c.b16 %v2734, %v2734
      %v2799 = vpack.c.b16 %v2735, %v2735
      %v2800 = vpack.c.b16 %v2736, %v2736
      %v2801 = vpack.c.b16 %v2737, %v2737
      %v2802 = vpack.c.b16 %v2738, %v2738
      %v2803 = vpack.c.b16 %v2739, %v2739
      %v2804 = vpack.c.b16 %v2740, %v2740
      %v2805 = vpack.c.b16 %v2741, %v2741
      %v2806 = vpack.c.b16 %v2742, %v2742
      %v2807 = vpack.c.b16 %v2743, %v2743
      %v2808 = vpack.c.b16 %v2744, %v2744
      %v2809 = vpack.c.b16 %v2745, %v2745
      %v2810 = vpack.c.b16 %v2746, %v2746
      %v2811 = vpack.c.b16 %v2747, %v2747
      %v2812 = vpack.c.b16 %v2748, %v2748
      %v2813 = vpack.c.b16 %v2749, %v2749
      %v2814 = vpack.c.b16 %v2750, %v2750
      %v2815 = vpack.c.b16 %v2751, %v2751
      %v2816 = vpack.c.b16 %v2752, %v2752
      %v2817 = vpack.c.b16 %v2753, %v2753
      %v2818 = vpack.c.b16 %v2754, %v2754
      %v2819 = vpack.c.b16 %v2755, %v2755
      %v2820 = vpack.c.b16 %v2756, %v2756
      %v2821 = vpack.c.b16 %v2757, %v2757
      %v2822 = vpack.c.b16 %v2758, %v2758
      %v2823 = vpack.c.b16 %v2759, %v2759
      %v2824 = vpack.c.b16 %v2760, %v2760
      %v2825 = vpack.c.b16 %v2761, %v2761
      %v2826 = vpack.c.b16 %v2762, %v2762
      %v2827 = vpack.c.b16 %v2763, %v2763
      %v2828 = vpack.c.b16 %v2764, %v2764
      %v2829 = vpack.c.b16 %v2765, %v2765
      %v2830 = vpack.c.b16 %v2766, %v2766
      %v2831 = vpack.c.b16 %v2767, %v2767
      %v2832 = vpack.c.b16 %v2768, %v2768
      %v2833 = vpack.c.b16 %v2769, %v2769
      %v2834 = vpack.c.b16 %v2770, %v2770
      %v2835 = vpack.c.b16 %v2771, %v2771
      %v2836 = vpack.c.b16 %v2772, %v2772
      %v2837 = vpack.c.b16 %v2773, %v2773
      %v2838 = vpack.c.b16 %v2774, %v2774
      %v2839 = vpack.c.b16 %v2775, %v2775
      %v2840 = vpack.c.b16 %v2776, %v2776
      %v2841 = vpack.c.b16 %v2777, %v2777
      %v2842 = vpack.c.b16 %v2778, %v2778
      %2907 = vst [vmem:[#allocation9] sm:$0xf] %v2779
      %2908 = vst [vmem:[#allocation9 + $0x4] sm:$0xf] %v2780
      %2909 = vst [vmem:[#allocation9 + $0x8] sm:$0xf] %v2781
      %2910 = vst [vmem:[#allocation9 + $0xc] sm:$0xf] %v2782
      %2911 = vst [vmem:[#allocation9 + $0x10] sm:$0xf] %v2783
      %2912 = vst [vmem:[#allocation9 + $0x14] sm:$0xf] %v2784
      %2913 = vst [vmem:[#allocation9 + $0x18] sm:$0xf] %v2785
      %2914 = vst [vmem:[#allocation9 + $0x1c] sm:$0xf] %v2786
      %2915 = vst [vmem:[#allocation9 + $0x20] sm:$0xf] %v2787
      %2916 = vst [vmem:[#allocation9 + $0x24] sm:$0xf] %v2788
      %2917 = vst [vmem:[#allocation9 + $0x28] sm:$0xf] %v2789
      %2918 = vst [vmem:[#allocation9 + $0x2c] sm:$0xf] %v2790
      %2919 = vst [vmem:[#allocation9 + $0x30] sm:$0xf] %v2791
      %2920 = vst [vmem:[#allocation9 + $0x34] sm:$0xf] %v2792
      %2921 = vst [vmem:[#allocation9 + $0x38] sm:$0xf] %v2793
      %2922 = vst [vmem:[#allocation9 + $0x3c] sm:$0xf] %v2794
      %2923 = vst [vmem:[#allocation9 + $0x40] sm:$0xf] %v2795
      %2924 = vst [vmem:[#allocation9 + $0x44] sm:$0xf] %v2796
      %2925 = vst [vmem:[#allocation9 + $0x48] sm:$0xf] %v2797
      %2926 = vst [vmem:[#allocation9 + $0x4c] sm:$0xf] %v2798
      %2927 = vst [vmem:[#allocation9 + $0x50] sm:$0xf] %v2799
      %2928 = vst [vmem:[#allocation9 + $0x54] sm:$0xf] %v2800
      %2929 = vst [vmem:[#allocation9 + $0x58] sm:$0xf] %v2801
      %2930 = vst [vmem:[#allocation9 + $0x5c] sm:$0xf] %v2802
      %2931 = vst [vmem:[#allocation9 + $0x60] sm:$0xf] %v2803
      %2932 = vst [vmem:[#allocation9 + $0x64] sm:$0xf] %v2804
      %2933 = vst [vmem:[#allocation9 + $0x68] sm:$0xf] %v2805
      %2934 = vst [vmem:[#allocation9 + $0x6c] sm:$0xf] %v2806
      %2935 = vst [vmem:[#allocation9 + $0x70] sm:$0xf] %v2807
      %2936 = vst [vmem:[#allocation9 + $0x74] sm:$0xf] %v2808
      %2937 = vst [vmem:[#allocation9 + $0x78] sm:$0xf] %v2809
      %2938 = vst [vmem:[#allocation9 + $0x7c] sm:$0xf] %v2810
      %2939 = vst [vmem:[#allocation9 + $0x80] sm:$0xf] %v2811
      %2940 = vst [vmem:[#allocation9 + $0x84] sm:$0xf] %v2812
      %2941 = vst [vmem:[#allocation9 + $0x88] sm:$0xf] %v2813
      %2942 = vst [vmem:[#allocation9 + $0x8c] sm:$0xf] %v2814
      %2943 = vst [vmem:[#allocation9 + $0x90] sm:$0xf] %v2815
      %2944 = vst [vmem:[#allocation9 + $0x94] sm:$0xf] %v2816
      %2945 = vst [vmem:[#allocation9 + $0x98] sm:$0xf] %v2817
      %2946 = vst [vmem:[#allocation9 + $0x9c] sm:$0xf] %v2818
      %2947 = vst [vmem:[#allocation9 + $0xa0] sm:$0xf] %v2819
      %2948 = vst [vmem:[#allocation9 + $0xa4] sm:$0xf] %v2820
      %2949 = vst [vmem:[#allocation9 + $0xa8] sm:$0xf] %v2821
      %2950 = vst [vmem:[#allocation9 + $0xac] sm:$0xf] %v2822
      %2951 = vst [vmem:[#allocation9 + $0xb0] sm:$0xf] %v2823
      %2952 = vst [vmem:[#allocation9 + $0xb4] sm:$0xf] %v2824
      %2953 = vst [vmem:[#allocation9 + $0xb8] sm:$0xf] %v2825
      %2954 = vst [vmem:[#allocation9 + $0xbc] sm:$0xf] %v2826
      %2955 = vst [vmem:[#allocation9 + $0xc0] sm:$0xf] %v2827
      %2956 = vst [vmem:[#allocation9 + $0xc4] sm:$0xf] %v2828
      %2957 = vst [vmem:[#allocation9 + $0xc8] sm:$0xf] %v2829
      %2958 = vst [vmem:[#allocation9 + $0xcc] sm:$0xf] %v2830
      %2959 = vst [vmem:[#allocation9 + $0xd0] sm:$0xf] %v2831
      %2960 = vst [vmem:[#allocation9 + $0xd4] sm:$0xf] %v2832
      %2961 = vst [vmem:[#allocation9 + $0xd8] sm:$0xf] %v2833
      %2962 = vst [vmem:[#allocation9 + $0xdc] sm:$0xf] %v2834
      %2963 = vst [vmem:[#allocation9 + $0xe0] sm:$0xf] %v2835
      %2964 = vst [vmem:[#allocation9 + $0xe4] sm:$0xf] %v2836
      %2965 = vst [vmem:[#allocation9 + $0xe8] sm:$0xf] %v2837
      %2966 = vst [vmem:[#allocation9 + $0xec] sm:$0xf] %v2838
      %2967 = vst [vmem:[#allocation9 + $0xf0] sm:$0xf] %v2839
      %2968 = vst [vmem:[#allocation9 + $0xf4] sm:$0xf] %v2840
      %2969 = vst [vmem:[#allocation9 + $0xf8] sm:$0xf] %v2841
      %2970 = vst [vmem:[#allocation9 + $0xfc] sm:$0xf] %v2842
    $region41: #{tpu_custom_call.1} parent=1 // pred_fallthru
      _
    // Predicated region
    $region42: #{tpu_custom_call.1} parent=1 // pred_check
      _
    $region43: #{tpu_custom_call.1} parent=1 // pred_check_branch
      %2972 = sbr.rel (0) target = $region45
    $region44: #{tpu_custom_call.1} parent=1 // pred_region
      %s2974 = ssub.s32 4096, 4096
      %2975 = vsyncadd [#allocation5], %s2974
      %s2976 = sshll.u32 [#allocation9], 4
      %s2977 = int_to_ptr.vmem [resolvable:$true] %s2976
      %2982 = dma.vmem_to_hbm [thread:$0]  %s2977, 4096, %s5, [#allocation5], 64, 64, 4
    $region45: #{tpu_custom_call.1} parent=1 // pred_fallthru
      _
    // Predicated region
    $region46: #{tpu_custom_call.1} parent=1 // pred_check
      _
    $region47: #{tpu_custom_call.1} parent=1 // pred_check_branch
      %2984 = sbr.rel (0) target = $region49
    $region48: #{tpu_custom_call.1} parent=1 // pred_region
      %2985 = dma.done [#allocation5], 4096
    $region49: #{tpu_custom_call.1} parent=1 // pred_fallthru
      _
    %2986 = vsyncpa [#allocation4], 1
    %2987 = vsyncpa [#allocation7], 1
    %2988 = vsyncpa [#allocation5], 1

</llo_original>
